<compile_context>
chip_gen: v7x
topology: tpu7x:2x2x1
jax: 0.10.0
libtpu: 0.0.40
codegen_flags: <defaults>
</compile_context>

<pallas_src>
import functools

import jax
import jax.numpy as jnp
from jax.experimental import pallas as pl
from jax.experimental.pallas import tpu as pltpu

P_DROP = 0.1
# P(drop) = P(bits < DROP_THRESHOLD) with bits ~ U[0, 2^32)
DROP_THRESHOLD = int(P_DROP * (1 << 32))


def _uniform_bits(shape, salt_u32):
    """Stateless counter-based PRNG (splitmix32-style finalizer).

    Uses only iota / add / mul / xor / shift on 32-bit ints, so it lowers both
    through Mosaic (TPU) and in interpret mode (CPU).
    """
    rows = jax.lax.broadcasted_iota(jnp.int32, shape, 0)
    cols = jax.lax.broadcasted_iota(jnp.int32, shape, 1)
    x = (rows * shape[1] + cols).astype(jnp.uint32)  # unique counter per elem
    x = x * jnp.uint32(0x9E3779B9) + salt_u32
    x = x ^ (x >> 16)
    x = x * jnp.uint32(0x7FEB352D)
    x = x ^ (x >> 15)
    x = x * jnp.uint32(0x846CA68B)
    x = x ^ (x >> 16)
    return x


def pno_kernel(x_ref, w1t_ref, b1_ref, w2t_ref, b2_ref, o_ref, *, seed, n_samples):
    """One row-tile of the PNO forward pass (all samples produced in-kernel).

    x_ref  : (C_in, TN)        VMEM   (channels on sublane, pixels on lane)
    w1t    : (HID, C_in)       b1 : (HID, 1)
    w2t    : (C_out, HID)      b2 : (C_out, 1)   (w2t already scaled by 1/(1-p))
    o_ref  : (n_samples, C_out, TN)   lane-dense output block
    """
    i = pl.program_id(0)  # row-tile index

    x = x_ref[...].astype(jnp.float32)                                  # (C_in, TN)
    # First 1x1 conv + GELU is deterministic -> compute once, reuse for all samples.
    h_pre = jnp.dot(w1t_ref[...], x, preferred_element_type=jnp.float32)  # (HID, TN)
    h_pre = h_pre + b1_ref[...]
    # NOTE: tanh-approx GELU (PyTorch nn.GELU() default is the erf form; the
    # difference is ~1e-3 relative and irrelevant to the wrapper semantics).
    h_act = jax.nn.gelu(h_pre, approximate=True)

    # Distinct, deterministic PRNG stream per (tile, sample).
    base = (jnp.uint32(seed)
            + i.astype(jnp.uint32) * jnp.uint32(0x85EBCA6B))

    for s in range(n_samples):  # static, small -> unrolled at trace time
        salt = base + jnp.uint32(s) * jnp.uint32(0xC2B2AE35)
        bits = _uniform_bits(h_act.shape, salt)
        # Inverted dropout; the 1/(1-p) rescale is folded into w2t.
        h = jnp.where(bits >= jnp.uint32(DROP_THRESHOLD), h_act, 0.0)
        y = jnp.dot(w2t_ref[...], h, preferred_element_type=jnp.float32)  # (C_out, TN)
        y = y + b2_ref[...]
        o_ref[s] = y.astype(o_ref.dtype)


def pno_wrapper_forward(x_nchw, params, *, seed=0, n_samples=3, tile_n=4096):
    """Equivalent of PNO_Wrapper.forward(input) for the inner 1x1-conv MLP.

    Returns (B, C_out, H, W, n_samples), matching
    torch.atleast_3d(torch.stack([model(x) for _ in range(S)], dim=-1)).
    """
    w1, b1, w2, b2 = params
    B, C_in, H, W = x_nchw.shape
    HID = w1.shape[1]
    C_out = w2.shape[1]
    N = B * H * W

    tile_n = min(tile_n, N)
    assert N % tile_n == 0, "row count must tile evenly"
    assert tile_n == N or tile_n % 128 == 0, "tile must be lane-aligned"

    # NCHW -> (C_in, N): channels on sublane, pixels on the 128-wide lane axis.
    x_cn = jnp.transpose(x_nchw, (1, 0, 2, 3)).reshape(C_in, N).astype(jnp.float32)

    # Pre-transpose weights for the (channels, pixels) layout and fold the
    # dropout rescale into the second conv's weights.
    w1t = jnp.asarray(w1, jnp.float32).T                                    # (HID, C_in)
    b1c = jnp.asarray(b1, jnp.float32).reshape(HID, 1)
    w2t = (jnp.asarray(w2, jnp.float32) * (1.0 / (1.0 - P_DROP))).T         # (C_out, HID)
    b2c = jnp.asarray(b2, jnp.float32).reshape(C_out, 1)

    kernel = functools.partial(pno_kernel, seed=int(seed) & 0xFFFFFFFF,
                               n_samples=int(n_samples))

    out = pl.pallas_call(
        kernel,
        out_shape=jax.ShapeDtypeStruct((n_samples, C_out, N), jnp.float32),
        grid=(N // tile_n,),
        in_specs=[
            pl.BlockSpec((C_in, tile_n), lambda i: (0, i)),
            pl.BlockSpec(w1t.shape, lambda i: (0, 0)),
            pl.BlockSpec(b1c.shape, lambda i: (0, 0)),
            pl.BlockSpec(w2t.shape, lambda i: (0, 0)),
            pl.BlockSpec(b2c.shape, lambda i: (0, 0)),
        ],
        out_specs=pl.BlockSpec((n_samples, C_out, tile_n), lambda i: (0, 0, i)),
        compiler_params=pltpu.CompilerParams(
            # Single independent grid axis -> let v7x shard it across its 2 TCs.
            dimension_semantics=("parallel",)),
    )(x_cn, w1t, b1c, w2t, b2c)

    # (S, C_out, N) -> (B, C_out, H, W, S)  == torch.stack(outputs, dim=-1)
    out = out.reshape(n_samples, C_out, B, H, W)
    out = jnp.transpose(out, (2, 1, 3, 4, 0))
    # torch.atleast_3d is a no-op here (output is already 5-D).
    return out


def init_params(key, c_in=4, hidden=32, c_out=4):
    k1, k2, k3, k4 = jax.random.split(key, 4)
    w1 = jax.random.normal(k1, (c_in, hidden), jnp.float32) * (1.0 / jnp.sqrt(c_in))
    b1 = jax.random.normal(k2, (1, hidden), jnp.float32) * 0.01
    w2 = jax.random.normal(k3, (hidden, c_out), jnp.float32) * (1.0 / jnp.sqrt(hidden))
    b2 = jax.random.normal(k4, (1, c_out), jnp.float32) * 0.01
    return w1, b1, w2, b2


if __name__ == "__main__":
    key = jax.random.PRNGKey(0)
    kx, kp = jax.random.split(key)

    B, C, H, W = 2, 4, 16, 16
    n_samples = 3
    x = jax.random.normal(kx, (B, C, H, W), jnp.float32)
    params = init_params(kp, c_in=C, hidden=32, c_out=C)

    out = pno_wrapper_forward(x, params, seed=1234, n_samples=n_samples)
    out = jax.block_until_ready(out)

    assert out.shape == (B, C, H, W, n_samples), out.shape
    assert bool(jnp.all(jnp.isfinite(out)))
    # Samples must differ (dropout is stochastic across the sample axis).
    assert bool(jnp.any(out[..., 0] != out[..., 1]))
    print("KERNEL_OK")
</pallas_src>

<mosaic_0001>
module attributes {stable_mosaic.version = 11 : i64} {
  func.func @pno_kernel(%arg0: i32, %arg1: memref<4x512xf32, #tpu.memory_space<vmem>>, %arg2: memref<32x4xf32, #tpu.memory_space<vmem>>, %arg3: memref<32x1xf32, #tpu.memory_space<vmem>>, %arg4: memref<4x32xf32, #tpu.memory_space<vmem>>, %arg5: memref<4x1xf32, #tpu.memory_space<vmem>>, %arg6: memref<3x4x512xf32, #tpu.memory_space<vmem>>) attributes {dimension_semantics = [#tpu.dimension_semantics<parallel>], iteration_bounds = array<i64: 1>, scalar_prefetch = 0 : i64, scratch_operands = 0 : i64, tpu.core_type = #tpu.core_type<tc>, window_params = [{transform_indices = @transform_0, window_bounds = array<i64: 4, 512>}, {pipeline_mode = #tpu.pipeline_mode<synchronous>, transform_indices = @transform_1, window_bounds = array<i64: 32, 4>}, {pipeline_mode = #tpu.pipeline_mode<synchronous>, transform_indices = @transform_2, window_bounds = array<i64: 32, 1>}, {pipeline_mode = #tpu.pipeline_mode<synchronous>, transform_indices = @transform_3, window_bounds = array<i64: 4, 32>}, {pipeline_mode = #tpu.pipeline_mode<synchronous>, transform_indices = @transform_4, window_bounds = array<i64: 4, 1>}, {transform_indices = @transform_5, window_bounds = array<i64: 3, 4, 512>}]} {
    %c0 = arith.constant 0 : index
    %c0_0 = arith.constant 0 : index
    %0 = vector.load %arg1[%c0, %c0_0] : memref<4x512xf32, #tpu.memory_space<vmem>>, vector<4x512xf32>
    %c0_1 = arith.constant 0 : index
    %c0_2 = arith.constant 0 : index
    %1 = vector.load %arg2[%c0_1, %c0_2] : memref<32x4xf32, #tpu.memory_space<vmem>>, vector<32x4xf32>
    %cst = arith.constant dense<0.000000e+00> : vector<32x512xf32>
    %2 = tpu.matmul %1, %0, %cst {dimension_numbers = #tpu.dot_dimension_numbers<[1], [0], [0], [1], [0, 0, 1, 1], [], []>} : vector<32x4xf32>, vector<4x512xf32>, vector<32x512xf32> -> vector<32x512xf32>
    %c0_3 = arith.constant 0 : index
    %c0_4 = arith.constant 0 : index
    %3 = vector.load %arg3[%c0_3, %c0_4] : memref<32x1xf32, #tpu.memory_space<vmem>>, vector<32x1xf32>
    %4 = vector.broadcast %3 : vector<32x1xf32> to vector<32x512xf32>
    %5 = arith.addf %2, %4 : vector<32x512xf32>
    %6 = arith.mulf %5, %5 : vector<32x512xf32>
    %7 = arith.mulf %5, %6 : vector<32x512xf32>
    %cst_5 = arith.constant 4.471500e-02 : f32
    %8 = vector.broadcast %cst_5 : f32 to vector<32x512xf32>
    %9 = arith.mulf %8, %7 : vector<32x512xf32>
    %10 = arith.addf %5, %9 : vector<32x512xf32>
    %cst_6 = arith.constant 0.797884583 : f32
    %11 = vector.broadcast %cst_6 : f32 to vector<32x512xf32>
    %12 = arith.mulf %11, %10 : vector<32x512xf32>
    %13 = math.tanh %12 : vector<32x512xf32>
    %cst_7 = arith.constant 1.000000e+00 : f32
    %14 = vector.broadcast %cst_7 : f32 to vector<32x512xf32>
    %15 = arith.addf %14, %13 : vector<32x512xf32>
    %cst_8 = arith.constant 5.000000e-01 : f32
    %16 = vector.broadcast %cst_8 : f32 to vector<32x512xf32>
    %17 = arith.mulf %16, %15 : vector<32x512xf32>
    %18 = arith.mulf %5, %17 : vector<32x512xf32>
    %c-2048144789_i32 = arith.constant -2048144789 : i32
    %19 = arith.muli %arg0, %c-2048144789_i32 : i32
    %c1234_i32 = arith.constant 1234 : i32
    %20 = arith.addi %c1234_i32, %19 : i32
    %c0_i32 = arith.constant 0 : i32
    %c-1028477387_i32 = arith.constant -1028477387 : i32
    %21 = arith.muli %c0_i32, %c-1028477387_i32 : i32
    %22 = arith.addi %20, %21 : i32
    %23 = tpu.iota {dimensions = array<i32: 0>} : vector<32x512xi32>
    %24 = tpu.iota {dimensions = array<i32: 1>} : vector<32x512xi32>
    %c512_i32 = arith.constant 512 : i32
    %25 = vector.broadcast %c512_i32 : i32 to vector<32x512xi32>
    %26 = arith.muli %23, %25 : vector<32x512xi32>
    %27 = arith.addi %26, %24 : vector<32x512xi32>
    %c-1640531527_i32 = arith.constant -1640531527 : i32
    %28 = vector.broadcast %c-1640531527_i32 : i32 to vector<32x512xi32>
    %29 = arith.muli %27, %28 : vector<32x512xi32>
    %30 = vector.broadcast %22 : i32 to vector<32x512xi32>
    %31 = arith.addi %29, %30 : vector<32x512xi32>
    %c16_i32 = arith.constant 16 : i32
    %32 = vector.broadcast %c16_i32 : i32 to vector<32x512xi32>
    %33 = arith.shrui %31, %32 : vector<32x512xi32>
    %34 = arith.xori %31, %33 : vector<32x512xi32>
    %c2146121005_i32 = arith.constant 2146121005 : i32
    %35 = vector.broadcast %c2146121005_i32 : i32 to vector<32x512xi32>
    %36 = arith.muli %34, %35 : vector<32x512xi32>
    %c15_i32 = arith.constant 15 : i32
    %37 = vector.broadcast %c15_i32 : i32 to vector<32x512xi32>
    %38 = arith.shrui %36, %37 : vector<32x512xi32>
    %39 = arith.xori %36, %38 : vector<32x512xi32>
    %c-2073254261_i32 = arith.constant -2073254261 : i32
    %40 = vector.broadcast %c-2073254261_i32 : i32 to vector<32x512xi32>
    %41 = arith.muli %39, %40 : vector<32x512xi32>
    %c16_i32_9 = arith.constant 16 : i32
    %42 = vector.broadcast %c16_i32_9 : i32 to vector<32x512xi32>
    %43 = arith.shrui %41, %42 : vector<32x512xi32>
    %44 = arith.xori %41, %43 : vector<32x512xi32>
    %c429496729_i32 = arith.constant 429496729 : i32
    %45 = vector.broadcast %c429496729_i32 : i32 to vector<32x512xi32>
    %46 = arith.cmpi uge, %44, %45 : vector<32x512xi32>
    %cst_10 = arith.constant 0.000000e+00 : f32
    %47 = vector.broadcast %cst_10 : f32 to vector<32x512xf32>
    %48 = arith.select %46, %18, %47 : vector<32x512xi1>, vector<32x512xf32>
    %c0_11 = arith.constant 0 : index
    %c0_12 = arith.constant 0 : index
    %49 = vector.load %arg4[%c0_11, %c0_12] : memref<4x32xf32, #tpu.memory_space<vmem>>, vector<4x32xf32>
    %cst_13 = arith.constant dense<0.000000e+00> : vector<4x512xf32>
    %50 = tpu.matmul %49, %48, %cst_13 {dimension_numbers = #tpu.dot_dimension_numbers<[1], [0], [0], [1], [0, 0, 1, 1], [], []>} : vector<4x32xf32>, vector<32x512xf32>, vector<4x512xf32> -> vector<4x512xf32>
    %c0_14 = arith.constant 0 : index
    %c0_15 = arith.constant 0 : index
    %51 = vector.load %arg5[%c0_14, %c0_15] : memref<4x1xf32, #tpu.memory_space<vmem>>, vector<4x1xf32>
    %52 = vector.broadcast %51 : vector<4x1xf32> to vector<4x512xf32>
    %53 = arith.addf %50, %52 : vector<4x512xf32>
    %c0_16 = arith.constant 0 : index
    %c0_17 = arith.constant 0 : index
    %c0_18 = arith.constant 0 : index
    %54 = vector.load %arg6[%c0_16, %c0_17, %c0_18] : memref<3x4x512xf32, #tpu.memory_space<vmem>>, vector<1x4x512xf32>
    %55 = vector.shape_cast %54 : vector<1x4x512xf32> to vector<4x512xf32>
    %56 = vector.shape_cast %53 : vector<4x512xf32> to vector<1x4x512xf32>
    tpu.vector_store %arg6[%c0_16, %c0_17, %c0_18], %56 {strides = array<i32>} : memref<3x4x512xf32, #tpu.memory_space<vmem>>, vector<1x4x512xf32>,
    %c1_i32 = arith.constant 1 : i32
    %c-1028477387_i32_19 = arith.constant -1028477387 : i32
    %57 = arith.muli %c1_i32, %c-1028477387_i32_19 : i32
    %58 = arith.addi %20, %57 : i32
    %59 = tpu.iota {dimensions = array<i32: 0>} : vector<32x512xi32>
    %60 = tpu.iota {dimensions = array<i32: 1>} : vector<32x512xi32>
    %c512_i32_20 = arith.constant 512 : i32
    %61 = vector.broadcast %c512_i32_20 : i32 to vector<32x512xi32>
    %62 = arith.muli %59, %61 : vector<32x512xi32>
    %63 = arith.addi %62, %60 : vector<32x512xi32>
    %c-1640531527_i32_21 = arith.constant -1640531527 : i32
    %64 = vector.broadcast %c-1640531527_i32_21 : i32 to vector<32x512xi32>
    %65 = arith.muli %63, %64 : vector<32x512xi32>
    %66 = vector.broadcast %58 : i32 to vector<32x512xi32>
    %67 = arith.addi %65, %66 : vector<32x512xi32>
    %c16_i32_22 = arith.constant 16 : i32
    %68 = vector.broadcast %c16_i32_22 : i32 to vector<32x512xi32>
    %69 = arith.shrui %67, %68 : vector<32x512xi32>
    %70 = arith.xori %67, %69 : vector<32x512xi32>
    %c2146121005_i32_23 = arith.constant 2146121005 : i32
    %71 = vector.broadcast %c2146121005_i32_23 : i32 to vector<32x512xi32>
    %72 = arith.muli %70, %71 : vector<32x512xi32>
    %c15_i32_24 = arith.constant 15 : i32
    %73 = vector.broadcast %c15_i32_24 : i32 to vector<32x512xi32>
    %74 = arith.shrui %72, %73 : vector<32x512xi32>
    %75 = arith.xori %72, %74 : vector<32x512xi32>
    %c-2073254261_i32_25 = arith.constant -2073254261 : i32
    %76 = vector.broadcast %c-2073254261_i32_25 : i32 to vector<32x512xi32>
    %77 = arith.muli %75, %76 : vector<32x512xi32>
    %c16_i32_26 = arith.constant 16 : i32
    %78 = vector.broadcast %c16_i32_26 : i32 to vector<32x512xi32>
    %79 = arith.shrui %77, %78 : vector<32x512xi32>
    %80 = arith.xori %77, %79 : vector<32x512xi32>
    %c429496729_i32_27 = arith.constant 429496729 : i32
    %81 = vector.broadcast %c429496729_i32_27 : i32 to vector<32x512xi32>
    %82 = arith.cmpi uge, %80, %81 : vector<32x512xi32>
    %cst_28 = arith.constant 0.000000e+00 : f32
    %83 = vector.broadcast %cst_28 : f32 to vector<32x512xf32>
    %84 = arith.select %82, %18, %83 : vector<32x512xi1>, vector<32x512xf32>
    %c0_29 = arith.constant 0 : index
    %c0_30 = arith.constant 0 : index
    %85 = vector.load %arg4[%c0_29, %c0_30] : memref<4x32xf32, #tpu.memory_space<vmem>>, vector<4x32xf32>
    %cst_31 = arith.constant dense<0.000000e+00> : vector<4x512xf32>
    %86 = tpu.matmul %85, %84, %cst_31 {dimension_numbers = #tpu.dot_dimension_numbers<[1], [0], [0], [1], [0, 0, 1, 1], [], []>} : vector<4x32xf32>, vector<32x512xf32>, vector<4x512xf32> -> vector<4x512xf32>
    %c0_32 = arith.constant 0 : index
    %c0_33 = arith.constant 0 : index
    %87 = vector.load %arg5[%c0_32, %c0_33] : memref<4x1xf32, #tpu.memory_space<vmem>>, vector<4x1xf32>
    %88 = vector.broadcast %87 : vector<4x1xf32> to vector<4x512xf32>
    %89 = arith.addf %86, %88 : vector<4x512xf32>
    %c1 = arith.constant 1 : index
    %c0_34 = arith.constant 0 : index
    %c0_35 = arith.constant 0 : index
    %90 = vector.load %arg6[%c1, %c0_34, %c0_35] : memref<3x4x512xf32, #tpu.memory_space<vmem>>, vector<1x4x512xf32>
    %91 = vector.shape_cast %90 : vector<1x4x512xf32> to vector<4x512xf32>
    %92 = vector.shape_cast %89 : vector<4x512xf32> to vector<1x4x512xf32>
    tpu.vector_store %arg6[%c1, %c0_34, %c0_35], %92 {strides = array<i32>} : memref<3x4x512xf32, #tpu.memory_space<vmem>>, vector<1x4x512xf32>,
    %c2_i32 = arith.constant 2 : i32
    %c-1028477387_i32_36 = arith.constant -1028477387 : i32
    %93 = arith.muli %c2_i32, %c-1028477387_i32_36 : i32
    %94 = arith.addi %20, %93 : i32
    %95 = tpu.iota {dimensions = array<i32: 0>} : vector<32x512xi32>
    %96 = tpu.iota {dimensions = array<i32: 1>} : vector<32x512xi32>
    %c512_i32_37 = arith.constant 512 : i32
    %97 = vector.broadcast %c512_i32_37 : i32 to vector<32x512xi32>
    %98 = arith.muli %95, %97 : vector<32x512xi32>
    %99 = arith.addi %98, %96 : vector<32x512xi32>
    %c-1640531527_i32_38 = arith.constant -1640531527 : i32
    %100 = vector.broadcast %c-1640531527_i32_38 : i32 to vector<32x512xi32>
    %101 = arith.muli %99, %100 : vector<32x512xi32>
    %102 = vector.broadcast %94 : i32 to vector<32x512xi32>
    %103 = arith.addi %101, %102 : vector<32x512xi32>
    %c16_i32_39 = arith.constant 16 : i32
    %104 = vector.broadcast %c16_i32_39 : i32 to vector<32x512xi32>
    %105 = arith.shrui %103, %104 : vector<32x512xi32>
    %106 = arith.xori %103, %105 : vector<32x512xi32>
    %c2146121005_i32_40 = arith.constant 2146121005 : i32
    %107 = vector.broadcast %c2146121005_i32_40 : i32 to vector<32x512xi32>
    %108 = arith.muli %106, %107 : vector<32x512xi32>
    %c15_i32_41 = arith.constant 15 : i32
    %109 = vector.broadcast %c15_i32_41 : i32 to vector<32x512xi32>
    %110 = arith.shrui %108, %109 : vector<32x512xi32>
    %111 = arith.xori %108, %110 : vector<32x512xi32>
    %c-2073254261_i32_42 = arith.constant -2073254261 : i32
    %112 = vector.broadcast %c-2073254261_i32_42 : i32 to vector<32x512xi32>
    %113 = arith.muli %111, %112 : vector<32x512xi32>
    %c16_i32_43 = arith.constant 16 : i32
    %114 = vector.broadcast %c16_i32_43 : i32 to vector<32x512xi32>
    %115 = arith.shrui %113, %114 : vector<32x512xi32>
    %116 = arith.xori %113, %115 : vector<32x512xi32>
    %c429496729_i32_44 = arith.constant 429496729 : i32
    %117 = vector.broadcast %c429496729_i32_44 : i32 to vector<32x512xi32>
    %118 = arith.cmpi uge, %116, %117 : vector<32x512xi32>
    %cst_45 = arith.constant 0.000000e+00 : f32
    %119 = vector.broadcast %cst_45 : f32 to vector<32x512xf32>
    %120 = arith.select %118, %18, %119 : vector<32x512xi1>, vector<32x512xf32>
    %c0_46 = arith.constant 0 : index
    %c0_47 = arith.constant 0 : index
    %121 = vector.load %arg4[%c0_46, %c0_47] : memref<4x32xf32, #tpu.memory_space<vmem>>, vector<4x32xf32>
    %cst_48 = arith.constant dense<0.000000e+00> : vector<4x512xf32>
    %122 = tpu.matmul %121, %120, %cst_48 {dimension_numbers = #tpu.dot_dimension_numbers<[1], [0], [0], [1], [0, 0, 1, 1], [], []>} : vector<4x32xf32>, vector<32x512xf32>, vector<4x512xf32> -> vector<4x512xf32>
    %c0_49 = arith.constant 0 : index
    %c0_50 = arith.constant 0 : index
    %123 = vector.load %arg5[%c0_49, %c0_50] : memref<4x1xf32, #tpu.memory_space<vmem>>, vector<4x1xf32>
    %124 = vector.broadcast %123 : vector<4x1xf32> to vector<4x512xf32>
    %125 = arith.addf %122, %124 : vector<4x512xf32>
    %c2 = arith.constant 2 : index
    %c0_51 = arith.constant 0 : index
    %c0_52 = arith.constant 0 : index
    %126 = vector.load %arg6[%c2, %c0_51, %c0_52] : memref<3x4x512xf32, #tpu.memory_space<vmem>>, vector<1x4x512xf32>
    %127 = vector.shape_cast %126 : vector<1x4x512xf32> to vector<4x512xf32>
    %128 = vector.shape_cast %125 : vector<4x512xf32> to vector<1x4x512xf32>
    tpu.vector_store %arg6[%c2, %c0_51, %c0_52], %128 {strides = array<i32>} : memref<3x4x512xf32, #tpu.memory_space<vmem>>, vector<1x4x512xf32>,
    return
  }
  func.func @transform_0(%arg0: i32) -> (i32, i32) {
    %c0_i32 = arith.constant 0 : i32
    %c0_i32_0 = arith.constant 0 : i32
    return %c0_i32, %arg0 : i32, i32
  }
  func.func @transform_1(%arg0: i32) -> (i32, i32) {
    %c0_i32 = arith.constant 0 : i32
    %c0_i32_0 = arith.constant 0 : i32
    %c0_i32_1 = arith.constant 0 : i32
    return %c0_i32, %c0_i32_0 : i32, i32
  }
  func.func @transform_2(%arg0: i32) -> (i32, i32) {
    %c0_i32 = arith.constant 0 : i32
    %c0_i32_0 = arith.constant 0 : i32
    %c0_i32_1 = arith.constant 0 : i32
    return %c0_i32, %c0_i32_0 : i32, i32
  }
  func.func @transform_3(%arg0: i32) -> (i32, i32) {
    %c0_i32 = arith.constant 0 : i32
    %c0_i32_0 = arith.constant 0 : i32
    %c0_i32_1 = arith.constant 0 : i32
    return %c0_i32, %c0_i32_0 : i32, i32
  }
  func.func @transform_4(%arg0: i32) -> (i32, i32) {
    %c0_i32 = arith.constant 0 : i32
    %c0_i32_0 = arith.constant 0 : i32
    %c0_i32_1 = arith.constant 0 : i32
    return %c0_i32, %c0_i32_0 : i32, i32
  }
  func.func @transform_5(%arg0: i32) -> (i32, i32, i32) {
    %c0_i32 = arith.constant 0 : i32
    %c0_i32_0 = arith.constant 0 : i32
    %c0_i32_1 = arith.constant 0 : i32
    return %c0_i32, %c0_i32_0, %arg0 : i32, i32, i32
  }
}

</mosaic_0001>

<llo_original>
// kernel: tpu_custom_call.1
$region0: #{tpu_custom_call.1}
  #allocation0 [shape = 'u32[]', space=smem, size = 0x4, offset = 0x4, fixed_abs, tag = 'smem constant byte address 0x4 - core index']
  #allocation1 [shape = 'u32[144,128]{1,0:T(1,128)}', space=vmem, size = 0x12000, scoped, tag = 'internal scratch']
  %s0 = inlined_call_operand.vmem [shape: f32[4,512], index: 0, kind: input, shape index: {}]
  %s1 = inlined_call_operand.vmem [shape: f32[32,4], index: 1, kind: input, shape index: {}]
  %s2 = inlined_call_operand.vmem [shape: f32[32,1], index: 2, kind: input, shape index: {}]
  %s3 = inlined_call_operand.vmem [shape: f32[4,32], index: 3, kind: input, shape index: {}]
  %s4 = inlined_call_operand.vmem [shape: f32[4,1], index: 4, kind: input, shape index: {}]
  %s5 = inlined_call_operand.hbm [shape: f32[3,4,512], index: 5, kind: output, shape index: {}]
  %s6 = sld [smem:[#allocation0]]
  $region30: #{tpu_custom_call.1} parent=0
    _
  %s8 = ssub.s32 1, %s6
  %s9 = scalar_select 0, %s8, %s6
  $region1: #{tpu_custom_call.1} parent=0
    #allocation2 [shape = 'u8[24576]{0}', space=vmem, size = 0x6000, scoped, tag = 'output window, operand 0, single buffered']
    #allocation3 [shape = 's32[1]{0}', space=sflag, size = 0x4, scoped, tag = 'scoped memory for tpu_custom_call.1']
    %10 = vsyncpa [#allocation3], 0
    // Predicated region
    $region2: #{tpu_custom_call.1} parent=1 // pred_check
      _
    $region3: #{tpu_custom_call.1} parent=1 // pred_check_branch
      %12 = sbr.rel (0) target = $region5
    $region4: #{tpu_custom_call.1} parent=1 // pred_region
      _
    $region5: #{tpu_custom_call.1} parent=1 // pred_fallthru
      _
    // Predicated region
    $region6: #{tpu_custom_call.1} parent=1 // pred_check
      _
    $region7: #{tpu_custom_call.1} parent=1 // pred_check_branch
      %14 = sbr.rel (0) target = $region9
    $region8: #{tpu_custom_call.1} parent=1 // pred_region
      _
    $region9: #{tpu_custom_call.1} parent=1 // pred_fallthru
      _
    // Predicated region
    $region10: #{tpu_custom_call.1} parent=1 // pred_check
      _
    $region11: #{tpu_custom_call.1} parent=1 // pred_check_branch
      %16 = sbr.rel (0) target = $region13
    $region12: #{tpu_custom_call.1} parent=1 // pred_region
      _
    $region13: #{tpu_custom_call.1} parent=1 // pred_fallthru
      _
    // Predicated region
    $region14: #{tpu_custom_call.1} parent=1 // pred_check
      _
    $region15: #{tpu_custom_call.1} parent=1 // pred_check_branch
      %18 = sbr.rel (0) target = $region17
    $region16: #{tpu_custom_call.1} parent=1 // pred_region
      _
    $region17: #{tpu_custom_call.1} parent=1 // pred_fallthru
      _
    // Predicated region
    $region18: #{tpu_custom_call.1} parent=1 // pred_check
      _
    $region19: #{tpu_custom_call.1} parent=1 // pred_check_branch
      %20 = sbr.rel (0) target = $region21
    $region20: #{tpu_custom_call.1} parent=1 // pred_region
      _
    $region21: #{tpu_custom_call.1} parent=1 // pred_fallthru
      _
    %v21 = vld [vmem:[%s0] sm:$0xff]
    %v22 = vld [vmem:[%s0 + $0x8] sm:$0xff]
    %v23 = vld [vmem:[%s1] sm:$0xff]
    %v24 = vld [vmem:[%s1 + $0x8] sm:$0xff]
    %v25 = vld [vmem:[%s1 + $0x10] sm:$0xff]
    %v26 = vld [vmem:[%s1 + $0x18] sm:$0xff]
    %v27 = vld [vmem:[%s2] sm:$0xff]
    %v28 = vld [vmem:[%s2 + $0x8] sm:$0xff]
    %v29 = vld [vmem:[%s2 + $0x10] sm:$0xff]
    %v30 = vld [vmem:[%s2 + $0x18] sm:$0xff]
    %32 = vset.pattern.permute.xlu0 0
    %33 = vperm.xlu0 %32, %v27
    %v34 = vpop.permute.xlu0 %33
    %37 = vset.pattern.permute.xlu0 0
    %38 = vperm.xlu0 %37, %v28
    %v39 = vpop.permute.xlu0 %38
    %42 = vset.pattern.permute.xlu0 0
    %43 = vperm.xlu0 %42, %v29
    %v44 = vpop.permute.xlu0 %43
    %47 = vset.pattern.permute.xlu0 0
    %48 = vperm.xlu0 %47, %v30
    %v49 = vpop.permute.xlu0 %48
    %v53 = vcombine.high %v21, %v21
    %v54 = vcombine.high %v22, %v22
    %vm55 = vcmask 31744
    %v57 = vsel %vm55, %v23, 0
    %v60 = vsel %vm55, %v24, 0
    %v63 = vsel %vm55, %v25, 0
    %v66 = vsel %vm55, %v26, 0
    %vm68 = vcmask 1043456
    %v69 = vsel %vm68, %v21, 0
    %v71 = vsel %vm68, %v53, 0
    %v73 = vsel %vm68, %v22, 0
    %v75 = vsel %vm68, %v54, 0
    %77 = vmatprep.subr.mxu0 %v71
    %78 = vmatpush1.msra.mxu0 %v69
    %79 = vmatprep.subr.mxu0 0.0
    %80 = vmatpush1.msra.mxu0 0.0
    %81 = vmatprep.subr.mxu0 0.0
    %82 = vmatpush1.msra.mxu0 0.0
    %83 = vmatprep.subr.mxu0 0.0
    %84 = vmatpush1.msra.mxu0 0.0
    %85 = vmatprep.subr.mxu0 0.0
    %86 = vmatpush1.msra.mxu0 0.0
    %87 = vmatprep.subr.mxu0 0.0
    %88 = vmatpush1.msra.mxu0 0.0
    %89 = vmatprep.subr.mxu0 0.0
    %90 = vmatpush1.msra.mxu0 0.0
    %91 = vmatprep.subr.mxu0 0.0
    %92 = vmatpush1.msra.mxu0 0.0
    %93 = vmatprep.subr.mxu0 0.0
    %94 = vmatpush1.msra.mxu0 0.0
    %95 = vmatprep.subr.mxu0 0.0
    %96 = vmatpush1.msra.mxu0 0.0
    %97 = vmatprep.subr.mxu0 0.0
    %98 = vmatpush1.msra.mxu0 0.0
    %99 = vmatprep.subr.mxu0 0.0
    %100 = vmatpush1.msra.mxu0 0.0
    %101 = vmatprep.subr.mxu0 0.0
    %102 = vmatpush1.msra.mxu0 0.0
    %103 = vmatprep.subr.mxu0 0.0
    %104 = vmatpush1.msra.mxu0 0.0
    %105 = vmatprep.subr.mxu0 0.0
    %106 = vmatpush1.msra.mxu0 0.0
    %107 = vmatprep.subr.mxu0 0.0
    %108 = vmatpush1.msra.mxu0 0.0
    %109 = vmatprep.subr.mxu0 0.0
    %110 = vmatpush1.msra.mxu0 0.0
    %111 = vmatprep.subr.mxu0 0.0
    %112 = vmatpush1.msra.mxu0 0.0
    %113 = vmatprep.subr.mxu0 0.0
    %114 = vmatpush1.msra.mxu0 0.0
    %115 = vmatprep.subr.mxu0 0.0
    %116 = vmatpush1.msra.mxu0 0.0
    %117 = vmatprep.subr.mxu0 0.0
    %118 = vmatpush1.msra.mxu0 0.0
    %119 = vmatprep.subr.mxu0 0.0
    %120 = vmatpush1.msra.mxu0 0.0
    %121 = vmatprep.subr.mxu0 0.0
    %122 = vmatpush1.msra.mxu0 0.0
    %123 = vmatprep.subr.mxu0 0.0
    %124 = vmatpush1.msra.mxu0 0.0
    %125 = vmatprep.subr.mxu0 0.0
    %126 = vmatpush1.msra.mxu0 0.0
    %127 = vmatprep.subr.mxu0 0.0
    %128 = vmatpush1.msra.mxu0 0.0
    %129 = vmatprep.subr.mxu0 0.0
    %130 = vmatpush1.msra.mxu0 0.0
    %131 = vmatprep.subr.mxu0 0.0
    %132 = vmatpush1.msra.mxu0 0.0
    %133 = vmatprep.subr.mxu0 0.0
    %134 = vmatpush1.msra.mxu0 0.0
    %135 = vmatprep.subr.mxu0 0.0
    %136 = vmatpush1.msra.mxu0 0.0
    %137 = vmatprep.subr.mxu0 0.0
    %138 = vmatpush1.msra.mxu0 0.0
    %139 = vmatprep.subr.mxu0 0.0
    %140 = vmatpush1.msra.mxu0 0.0
    %141 = vmatprep.mubr.f32.mxu0 0.0
    %142 = vmatmul.mubr.f32.gmra.mrb[0].mxu0 %v57
    %v143 = vpop.f32.mrb[0].mxu0
    %v144 = vadd.f32 %v34, %v143
    %v145 = vpop.f32.mrb[0].mxu0
    %v146 = vadd.f32 %v34, %v145
    %147 = vmatprep.mubr.f32.mxu0 0.0
    %148 = vmatmul.mubr.f32.gmra.mrb[0].mxu0 %v60
    %v149 = vpop.f32.mrb[0].mxu0
    %v150 = vadd.f32 %v39, %v149
    %v151 = vpop.f32.mrb[0].mxu0
    %v152 = vadd.f32 %v39, %v151
    %153 = vmatprep.mubr.f32.mxu0 0.0
    %154 = vmatmul.mubr.f32.gmra.mrb[0].mxu0 %v63
    %v155 = vpop.f32.mrb[0].mxu0
    %v156 = vadd.f32 %v44, %v155
    %v157 = vpop.f32.mrb[0].mxu0
    %v158 = vadd.f32 %v44, %v157
    %159 = vmatprep.mubr.f32.mxu0 0.0
    %160 = vmatmul.mubr.f32.gmra.mrb[0].mxu0 %v66
    %v161 = vpop.f32.mrb[0].mxu0
    %v162 = vadd.f32 %v49, %v161
    %v163 = vpop.f32.mrb[0].mxu0
    %v164 = vadd.f32 %v49, %v163
    %165 = vdwg.mxu0
    %166 = vmatprep.subr.mxu0 %v75
    %167 = vmatpush1.msra.mxu0 %v73
    %168 = vmatprep.subr.mxu0 0.0
    %169 = vmatpush1.msra.mxu0 0.0
    %170 = vmatprep.subr.mxu0 0.0
    %171 = vmatpush1.msra.mxu0 0.0
    %172 = vmatprep.subr.mxu0 0.0
    %173 = vmatpush1.msra.mxu0 0.0
    %174 = vmatprep.subr.mxu0 0.0
    %175 = vmatpush1.msra.mxu0 0.0
    %176 = vmatprep.subr.mxu0 0.0
    %177 = vmatpush1.msra.mxu0 0.0
    %178 = vmatprep.subr.mxu0 0.0
    %179 = vmatpush1.msra.mxu0 0.0
    %180 = vmatprep.subr.mxu0 0.0
    %181 = vmatpush1.msra.mxu0 0.0
    %182 = vmatprep.subr.mxu0 0.0
    %183 = vmatpush1.msra.mxu0 0.0
    %184 = vmatprep.subr.mxu0 0.0
    %185 = vmatpush1.msra.mxu0 0.0
    %186 = vmatprep.subr.mxu0 0.0
    %187 = vmatpush1.msra.mxu0 0.0
    %188 = vmatprep.subr.mxu0 0.0
    %189 = vmatpush1.msra.mxu0 0.0
    %190 = vmatprep.subr.mxu0 0.0
    %191 = vmatpush1.msra.mxu0 0.0
    %192 = vmatprep.subr.mxu0 0.0
    %193 = vmatpush1.msra.mxu0 0.0
    %194 = vmatprep.subr.mxu0 0.0
    %195 = vmatpush1.msra.mxu0 0.0
    %196 = vmatprep.subr.mxu0 0.0
    %197 = vmatpush1.msra.mxu0 0.0
    %198 = vmatprep.subr.mxu0 0.0
    %199 = vmatpush1.msra.mxu0 0.0
    %200 = vmatprep.subr.mxu0 0.0
    %201 = vmatpush1.msra.mxu0 0.0
    %202 = vmatprep.subr.mxu0 0.0
    %203 = vmatpush1.msra.mxu0 0.0
    %204 = vmatprep.subr.mxu0 0.0
    %205 = vmatpush1.msra.mxu0 0.0
    %206 = vmatprep.subr.mxu0 0.0
    %207 = vmatpush1.msra.mxu0 0.0
    %208 = vmatprep.subr.mxu0 0.0
    %209 = vmatpush1.msra.mxu0 0.0
    %210 = vmatprep.subr.mxu0 0.0
    %211 = vmatpush1.msra.mxu0 0.0
    %212 = vmatprep.subr.mxu0 0.0
    %213 = vmatpush1.msra.mxu0 0.0
    %214 = vmatprep.subr.mxu0 0.0
    %215 = vmatpush1.msra.mxu0 0.0
    %216 = vmatprep.subr.mxu0 0.0
    %217 = vmatpush1.msra.mxu0 0.0
    %218 = vmatprep.subr.mxu0 0.0
    %219 = vmatpush1.msra.mxu0 0.0
    %220 = vmatprep.subr.mxu0 0.0
    %221 = vmatpush1.msra.mxu0 0.0
    %222 = vmatprep.subr.mxu0 0.0
    %223 = vmatpush1.msra.mxu0 0.0
    %224 = vmatprep.subr.mxu0 0.0
    %225 = vmatpush1.msra.mxu0 0.0
    %226 = vmatprep.subr.mxu0 0.0
    %227 = vmatpush1.msra.mxu0 0.0
    %228 = vmatprep.subr.mxu0 0.0
    %229 = vmatpush1.msra.mxu0 0.0
    %230 = vmatprep.mubr.f32.mxu0 0.0
    %231 = vmatmul.mubr.f32.gmra.mrb[0].mxu0 %v57
    %v232 = vpop.f32.mrb[0].mxu0
    %v233 = vadd.f32 %v34, %v232
    %v234 = vpop.f32.mrb[0].mxu0
    %v235 = vadd.f32 %v34, %v234
    %236 = vmatprep.mubr.f32.mxu0 0.0
    %237 = vmatmul.mubr.f32.gmra.mrb[0].mxu0 %v60
    %v238 = vpop.f32.mrb[0].mxu0
    %v239 = vadd.f32 %v39, %v238
    %v240 = vpop.f32.mrb[0].mxu0
    %v241 = vadd.f32 %v39, %v240
    %242 = vmatprep.mubr.f32.mxu0 0.0
    %243 = vmatmul.mubr.f32.gmra.mrb[0].mxu0 %v63
    %v244 = vpop.f32.mrb[0].mxu0
    %v245 = vadd.f32 %v44, %v244
    %v246 = vpop.f32.mrb[0].mxu0
    %v247 = vadd.f32 %v44, %v246
    %248 = vmatprep.mubr.f32.mxu0 0.0
    %249 = vmatmul.mubr.f32.gmra.mrb[0].mxu0 %v66
    %v250 = vpop.f32.mrb[0].mxu0
    %v251 = vadd.f32 %v49, %v250
    %v252 = vpop.f32.mrb[0].mxu0
    %v253 = vadd.f32 %v49, %v252
    %254 = vdwg.mxu0
    %v255 = vmul.f32 %v144, %v144
    %v256 = vmul.f32 %v146, %v146
    %v257 = vmul.f32 %v233, %v233
    %v258 = vmul.f32 %v235, %v235
    %v259 = vmul.f32 %v150, %v150
    %v260 = vmul.f32 %v152, %v152
    %v261 = vmul.f32 %v239, %v239
    %v262 = vmul.f32 %v241, %v241
    %v263 = vmul.f32 %v156, %v156
    %v264 = vmul.f32 %v158, %v158
    %v265 = vmul.f32 %v245, %v245
    %v266 = vmul.f32 %v247, %v247
    %v267 = vmul.f32 %v162, %v162
    %v268 = vmul.f32 %v164, %v164
    %v269 = vmul.f32 %v251, %v251
    %v270 = vmul.f32 %v253, %v253
    %v271 = vmul.f32 %v144, %v255
    %v272 = vmul.f32 %v146, %v256
    %v273 = vmul.f32 %v233, %v257
    %v274 = vmul.f32 %v235, %v258
    %v275 = vmul.f32 %v150, %v259
    %v276 = vmul.f32 %v152, %v260
    %v277 = vmul.f32 %v239, %v261
    %v278 = vmul.f32 %v241, %v262
    %v279 = vmul.f32 %v156, %v263
    %v280 = vmul.f32 %v158, %v264
    %v281 = vmul.f32 %v245, %v265
    %v282 = vmul.f32 %v247, %v266
    %v283 = vmul.f32 %v162, %v267
    %v284 = vmul.f32 %v164, %v268
    %v285 = vmul.f32 %v251, %v269
    %v286 = vmul.f32 %v253, %v270
    %v287 = vmul.f32 %v271, 0.044715
    %v288 = vmul.f32 %v272, 0.044715
    %v289 = vmul.f32 %v273, 0.044715
    %v290 = vmul.f32 %v274, 0.044715
    %v291 = vmul.f32 %v275, 0.044715
    %v292 = vmul.f32 %v276, 0.044715
    %v293 = vmul.f32 %v277, 0.044715
    %v294 = vmul.f32 %v278, 0.044715
    %v295 = vmul.f32 %v279, 0.044715
    %v296 = vmul.f32 %v280, 0.044715
    %v297 = vmul.f32 %v281, 0.044715
    %v298 = vmul.f32 %v282, 0.044715
    %v299 = vmul.f32 %v283, 0.044715
    %v300 = vmul.f32 %v284, 0.044715
    %v301 = vmul.f32 %v285, 0.044715
    %v302 = vmul.f32 %v286, 0.044715
    %v303 = vadd.f32 %v144, %v287
    %v304 = vadd.f32 %v146, %v288
    %v305 = vadd.f32 %v233, %v289
    %v306 = vadd.f32 %v235, %v290
    %v307 = vadd.f32 %v150, %v291
    %v308 = vadd.f32 %v152, %v292
    %v309 = vadd.f32 %v239, %v293
    %v310 = vadd.f32 %v241, %v294
    %v311 = vadd.f32 %v156, %v295
    %v312 = vadd.f32 %v158, %v296
    %v313 = vadd.f32 %v245, %v297
    %v314 = vadd.f32 %v247, %v298
    %v315 = vadd.f32 %v162, %v299
    %v316 = vadd.f32 %v164, %v300
    %v317 = vadd.f32 %v251, %v301
    %v318 = vadd.f32 %v253, %v302
    %v319 = vmul.f32 %v303, 0.7978846
    %v320 = vmul.f32 %v304, 0.7978846
    %v321 = vmul.f32 %v305, 0.7978846
    %v322 = vmul.f32 %v306, 0.7978846
    %v323 = vmul.f32 %v307, 0.7978846
    %v324 = vmul.f32 %v308, 0.7978846
    %v325 = vmul.f32 %v309, 0.7978846
    %v326 = vmul.f32 %v310, 0.7978846
    %v327 = vmul.f32 %v311, 0.7978846
    %v328 = vmul.f32 %v312, 0.7978846
    %v329 = vmul.f32 %v313, 0.7978846
    %v330 = vmul.f32 %v314, 0.7978846
    %v331 = vmul.f32 %v315, 0.7978846
    %v332 = vmul.f32 %v316, 0.7978846
    %v333 = vmul.f32 %v317, 0.7978846
    %v334 = vmul.f32 %v318, 0.7978846
    %v335 = vtanh.pop %v319
    %v336 = vtanh.pop %v320
    %v337 = vtanh.pop %v321
    %v338 = vtanh.pop %v322
    %v339 = vtanh.pop %v323
    %v340 = vtanh.pop %v324
    %v341 = vtanh.pop %v325
    %v342 = vtanh.pop %v326
    %v343 = vtanh.pop %v327
    %v344 = vtanh.pop %v328
    %v345 = vtanh.pop %v329
    %v346 = vtanh.pop %v330
    %v347 = vtanh.pop %v331
    %v348 = vtanh.pop %v332
    %v349 = vtanh.pop %v333
    %v350 = vtanh.pop %v334
    %v351 = vadd.f32 %v335, 1.0
    %v352 = vadd.f32 %v336, 1.0
    %v353 = vadd.f32 %v337, 1.0
    %v354 = vadd.f32 %v338, 1.0
    %v355 = vadd.f32 %v339, 1.0
    %v356 = vadd.f32 %v340, 1.0
    %v357 = vadd.f32 %v341, 1.0
    %v358 = vadd.f32 %v342, 1.0
    %v359 = vadd.f32 %v343, 1.0
    %v360 = vadd.f32 %v344, 1.0
    %v361 = vadd.f32 %v345, 1.0
    %v362 = vadd.f32 %v346, 1.0
    %v363 = vadd.f32 %v347, 1.0
    %v364 = vadd.f32 %v348, 1.0
    %v365 = vadd.f32 %v349, 1.0
    %v366 = vadd.f32 %v350, 1.0
    %v367 = vmul.f32 %v351, 0.5
    %v368 = vmul.f32 %v352, 0.5
    %v369 = vmul.f32 %v353, 0.5
    %v370 = vmul.f32 %v354, 0.5
    %v371 = vmul.f32 %v355, 0.5
    %v372 = vmul.f32 %v356, 0.5
    %v373 = vmul.f32 %v357, 0.5
    %v374 = vmul.f32 %v358, 0.5
    %v375 = vmul.f32 %v359, 0.5
    %v376 = vmul.f32 %v360, 0.5
    %v377 = vmul.f32 %v361, 0.5
    %v378 = vmul.f32 %v362, 0.5
    %v379 = vmul.f32 %v363, 0.5
    %v380 = vmul.f32 %v364, 0.5
    %v381 = vmul.f32 %v365, 0.5
    %v382 = vmul.f32 %v366, 0.5
    %v383 = vmul.f32 %v144, %v367
    %v384 = vmul.f32 %v146, %v368
    %v385 = vmul.f32 %v233, %v369
    %v386 = vmul.f32 %v235, %v370
    %v387 = vmul.f32 %v150, %v371
    %v388 = vmul.f32 %v152, %v372
    %v389 = vmul.f32 %v239, %v373
    %v390 = vmul.f32 %v241, %v374
    %v391 = vmul.f32 %v156, %v375
    %v392 = vmul.f32 %v158, %v376
    %v393 = vmul.f32 %v245, %v377
    %v394 = vmul.f32 %v247, %v378
    %v395 = vmul.f32 %v162, %v379
    %v396 = vmul.f32 %v164, %v380
    %v397 = vmul.f32 %v251, %v381
    %v398 = vmul.f32 %v253, %v382
    %s399 = smul.u32 0, 2246822507
    %s400 = sadd.s32 %s399, 1234
    %v401 = vlaneseq
    %v402 = vshrl.u32 %v401, 7
    %v403 = vadd.s32 %v402, 8
    %v404 = vadd.s32 %v402, 16
    %v405 = vadd.s32 %v402, 24
    %v406 = vlaneseq
    %v407 = vand.u32 %v406, 127
    %v408 = vadd.s32 %v407, 128
    %v409 = vadd.s32 %v407, 256
    %v410 = vadd.s32 %v407, 384
    %v411 = vmul.u32 %v402, 512
    %v412 = vmul.u32 %v403, 512
    %v413 = vmul.u32 %v404, 512
    %v414 = vmul.u32 %v405, 512
    %v415 = vadd.s32 %v411, %v407
    %v416 = vadd.s32 %v411, %v408
    %v417 = vadd.s32 %v411, %v409
    %v418 = vadd.s32 %v411, %v410
    %v419 = vadd.s32 %v412, %v407
    %v420 = vadd.s32 %v412, %v408
    %v421 = vadd.s32 %v412, %v409
    %v422 = vadd.s32 %v412, %v410
    %v423 = vadd.s32 %v413, %v407
    %v424 = vadd.s32 %v413, %v408
    %v425 = vadd.s32 %v413, %v409
    %v426 = vadd.s32 %v413, %v410
    %v427 = vadd.s32 %v414, %v407
    %v428 = vadd.s32 %v414, %v408
    %v429 = vadd.s32 %v414, %v409
    %v430 = vadd.s32 %v414, %v410
    %v431 = vmul.u32 %v415, 2654435769
    %v432 = vmul.u32 %v416, 2654435769
    %v433 = vmul.u32 %v417, 2654435769
    %v434 = vmul.u32 %v418, 2654435769
    %v435 = vmul.u32 %v419, 2654435769
    %v436 = vmul.u32 %v420, 2654435769
    %v437 = vmul.u32 %v421, 2654435769
    %v438 = vmul.u32 %v422, 2654435769
    %v439 = vmul.u32 %v423, 2654435769
    %v440 = vmul.u32 %v424, 2654435769
    %v441 = vmul.u32 %v425, 2654435769
    %v442 = vmul.u32 %v426, 2654435769
    %v443 = vmul.u32 %v427, 2654435769
    %v444 = vmul.u32 %v428, 2654435769
    %v445 = vmul.u32 %v429, 2654435769
    %v446 = vmul.u32 %v430, 2654435769
    %v447 = vstv %s400
    %v448 = vadd.s32 %v431, %v447
    %v449 = vadd.s32 %v432, %v447
    %v450 = vadd.s32 %v433, %v447
    %v451 = vadd.s32 %v434, %v447
    %v452 = vadd.s32 %v435, %v447
    %v453 = vadd.s32 %v436, %v447
    %v454 = vadd.s32 %v437, %v447
    %v455 = vadd.s32 %v438, %v447
    %v456 = vadd.s32 %v439, %v447
    %v457 = vadd.s32 %v440, %v447
    %v458 = vadd.s32 %v441, %v447
    %v459 = vadd.s32 %v442, %v447
    %v460 = vadd.s32 %v443, %v447
    %v461 = vadd.s32 %v444, %v447
    %v462 = vadd.s32 %v445, %v447
    %v463 = vadd.s32 %v446, %v447
    %v464 = vshrl.u32 %v448, 16
    %v465 = vshrl.u32 %v449, 16
    %v466 = vshrl.u32 %v450, 16
    %v467 = vshrl.u32 %v451, 16
    %v468 = vshrl.u32 %v452, 16
    %v469 = vshrl.u32 %v453, 16
    %v470 = vshrl.u32 %v454, 16
    %v471 = vshrl.u32 %v455, 16
    %v472 = vshrl.u32 %v456, 16
    %v473 = vshrl.u32 %v457, 16
    %v474 = vshrl.u32 %v458, 16
    %v475 = vshrl.u32 %v459, 16
    %v476 = vshrl.u32 %v460, 16
    %v477 = vshrl.u32 %v461, 16
    %v478 = vshrl.u32 %v462, 16
    %v479 = vshrl.u32 %v463, 16
    %v480 = vxor.u32 %v448, %v464
    %v481 = vxor.u32 %v449, %v465
    %v482 = vxor.u32 %v450, %v466
    %v483 = vxor.u32 %v451, %v467
    %v484 = vxor.u32 %v452, %v468
    %v485 = vxor.u32 %v453, %v469
    %v486 = vxor.u32 %v454, %v470
    %v487 = vxor.u32 %v455, %v471
    %v488 = vxor.u32 %v456, %v472
    %v489 = vxor.u32 %v457, %v473
    %v490 = vxor.u32 %v458, %v474
    %v491 = vxor.u32 %v459, %v475
    %v492 = vxor.u32 %v460, %v476
    %v493 = vxor.u32 %v461, %v477
    %v494 = vxor.u32 %v462, %v478
    %v495 = vxor.u32 %v463, %v479
    %v496 = vmul.u32 %v480, 2146121005
    %v497 = vmul.u32 %v481, 2146121005
    %v498 = vmul.u32 %v482, 2146121005
    %v499 = vmul.u32 %v483, 2146121005
    %v500 = vmul.u32 %v484, 2146121005
    %v501 = vmul.u32 %v485, 2146121005
    %v502 = vmul.u32 %v486, 2146121005
    %v503 = vmul.u32 %v487, 2146121005
    %v504 = vmul.u32 %v488, 2146121005
    %v505 = vmul.u32 %v489, 2146121005
    %v506 = vmul.u32 %v490, 2146121005
    %v507 = vmul.u32 %v491, 2146121005
    %v508 = vmul.u32 %v492, 2146121005
    %v509 = vmul.u32 %v493, 2146121005
    %v510 = vmul.u32 %v494, 2146121005
    %v511 = vmul.u32 %v495, 2146121005
    %v512 = vshrl.u32 %v496, 15
    %v513 = vshrl.u32 %v497, 15
    %v514 = vshrl.u32 %v498, 15
    %v515 = vshrl.u32 %v499, 15
    %v516 = vshrl.u32 %v500, 15
    %v517 = vshrl.u32 %v501, 15
    %v518 = vshrl.u32 %v502, 15
    %v519 = vshrl.u32 %v503, 15
    %v520 = vshrl.u32 %v504, 15
    %v521 = vshrl.u32 %v505, 15
    %v522 = vshrl.u32 %v506, 15
    %v523 = vshrl.u32 %v507, 15
    %v524 = vshrl.u32 %v508, 15
    %v525 = vshrl.u32 %v509, 15
    %v526 = vshrl.u32 %v510, 15
    %v527 = vshrl.u32 %v511, 15
    %v528 = vxor.u32 %v496, %v512
    %v529 = vxor.u32 %v497, %v513
    %v530 = vxor.u32 %v498, %v514
    %v531 = vxor.u32 %v499, %v515
    %v532 = vxor.u32 %v500, %v516
    %v533 = vxor.u32 %v501, %v517
    %v534 = vxor.u32 %v502, %v518
    %v535 = vxor.u32 %v503, %v519
    %v536 = vxor.u32 %v504, %v520
    %v537 = vxor.u32 %v505, %v521
    %v538 = vxor.u32 %v506, %v522
    %v539 = vxor.u32 %v507, %v523
    %v540 = vxor.u32 %v508, %v524
    %v541 = vxor.u32 %v509, %v525
    %v542 = vxor.u32 %v510, %v526
    %v543 = vxor.u32 %v511, %v527
    %v544 = vmul.u32 %v528, 2221713035
    %v545 = vmul.u32 %v529, 2221713035
    %v546 = vmul.u32 %v530, 2221713035
    %v547 = vmul.u32 %v531, 2221713035
    %v548 = vmul.u32 %v532, 2221713035
    %v549 = vmul.u32 %v533, 2221713035
    %v550 = vmul.u32 %v534, 2221713035
    %v551 = vmul.u32 %v535, 2221713035
    %v552 = vmul.u32 %v536, 2221713035
    %v553 = vmul.u32 %v537, 2221713035
    %v554 = vmul.u32 %v538, 2221713035
    %v555 = vmul.u32 %v539, 2221713035
    %v556 = vmul.u32 %v540, 2221713035
    %v557 = vmul.u32 %v541, 2221713035
    %v558 = vmul.u32 %v542, 2221713035
    %v559 = vmul.u32 %v543, 2221713035
    %v560 = vshrl.u32 %v544, 16
    %v561 = vshrl.u32 %v545, 16
    %v562 = vshrl.u32 %v546, 16
    %v563 = vshrl.u32 %v547, 16
    %v564 = vshrl.u32 %v548, 16
    %v565 = vshrl.u32 %v549, 16
    %v566 = vshrl.u32 %v550, 16
    %v567 = vshrl.u32 %v551, 16
    %v568 = vshrl.u32 %v552, 16
    %v569 = vshrl.u32 %v553, 16
    %v570 = vshrl.u32 %v554, 16
    %v571 = vshrl.u32 %v555, 16
    %v572 = vshrl.u32 %v556, 16
    %v573 = vshrl.u32 %v557, 16
    %v574 = vshrl.u32 %v558, 16
    %v575 = vshrl.u32 %v559, 16
    %v576 = vxor.u32 %v544, %v560
    %v577 = vxor.u32 %v545, %v561
    %v578 = vxor.u32 %v546, %v562
    %v579 = vxor.u32 %v547, %v563
    %v580 = vxor.u32 %v548, %v564
    %v581 = vxor.u32 %v549, %v565
    %v582 = vxor.u32 %v550, %v566
    %v583 = vxor.u32 %v551, %v567
    %v584 = vxor.u32 %v552, %v568
    %v585 = vxor.u32 %v553, %v569
    %v586 = vxor.u32 %v554, %v570
    %v587 = vxor.u32 %v555, %v571
    %v588 = vxor.u32 %v556, %v572
    %v589 = vxor.u32 %v557, %v573
    %v590 = vxor.u32 %v558, %v574
    %v591 = vxor.u32 %v559, %v575
    %vm592 = vcmp.ge.u32.totalorder %v576, 429496729
    %vm593 = vcmp.ge.u32.totalorder %v577, 429496729
    %vm594 = vcmp.ge.u32.totalorder %v578, 429496729
    %vm595 = vcmp.ge.u32.totalorder %v579, 429496729
    %vm596 = vcmp.ge.u32.totalorder %v580, 429496729
    %vm597 = vcmp.ge.u32.totalorder %v581, 429496729
    %vm598 = vcmp.ge.u32.totalorder %v582, 429496729
    %vm599 = vcmp.ge.u32.totalorder %v583, 429496729
    %vm600 = vcmp.ge.u32.totalorder %v584, 429496729
    %vm601 = vcmp.ge.u32.totalorder %v585, 429496729
    %vm602 = vcmp.ge.u32.totalorder %v586, 429496729
    %vm603 = vcmp.ge.u32.totalorder %v587, 429496729
    %vm604 = vcmp.ge.u32.totalorder %v588, 429496729
    %vm605 = vcmp.ge.u32.totalorder %v589, 429496729
    %vm606 = vcmp.ge.u32.totalorder %v590, 429496729
    %vm607 = vcmp.ge.u32.totalorder %v591, 429496729
    %v608 = vsel %vm592, %v383, 0.0
    %v609 = vsel %vm593, %v384, 0.0
    %v610 = vsel %vm594, %v385, 0.0
    %v611 = vsel %vm595, %v386, 0.0
    %v612 = vsel %vm596, %v387, 0.0
    %v613 = vsel %vm597, %v388, 0.0
    %v614 = vsel %vm598, %v389, 0.0
    %v615 = vsel %vm599, %v390, 0.0
    %v616 = vsel %vm600, %v391, 0.0
    %v617 = vsel %vm601, %v392, 0.0
    %v618 = vsel %vm602, %v393, 0.0
    %v619 = vsel %vm603, %v394, 0.0
    %v620 = vsel %vm604, %v395, 0.0
    %v621 = vsel %vm605, %v396, 0.0
    %v622 = vsel %vm606, %v397, 0.0
    %v623 = vsel %vm607, %v398, 0.0
    %v624 = vld [vmem:[%s3] sm:$0xf]
    %v625 = vld [vmem:[%s4] sm:$0xf]
    %627 = vset.pattern.permute.xlu0 0
    %628 = vperm.xlu0 %627, %v625
    %v629 = vpop.permute.xlu0 %628
    %vm631 = vcmask 261120
    %v633 = vsel %vm631, %v624, 0
    %635 = vmatprep.subr.mxu0 %v609
    %636 = vmatpush1.msra.mxu0 %v608
    %637 = vmatprep.subr.mxu0 %v613
    %638 = vmatpush1.msra.mxu0 %v612
    %639 = vmatprep.subr.mxu0 %v617
    %640 = vmatpush1.msra.mxu0 %v616
    %641 = vmatprep.subr.mxu0 %v621
    %642 = vmatpush1.msra.mxu0 %v620
    %643 = vmatprep.subr.mxu0 0.0
    %644 = vmatpush1.msra.mxu0 0.0
    %645 = vmatprep.subr.mxu0 0.0
    %646 = vmatpush1.msra.mxu0 0.0
    %647 = vmatprep.subr.mxu0 0.0
    %648 = vmatpush1.msra.mxu0 0.0
    %649 = vmatprep.subr.mxu0 0.0
    %650 = vmatpush1.msra.mxu0 0.0
    %651 = vmatprep.subr.mxu0 0.0
    %652 = vmatpush1.msra.mxu0 0.0
    %653 = vmatprep.subr.mxu0 0.0
    %654 = vmatpush1.msra.mxu0 0.0
    %655 = vmatprep.subr.mxu0 0.0
    %656 = vmatpush1.msra.mxu0 0.0
    %657 = vmatprep.subr.mxu0 0.0
    %658 = vmatpush1.msra.mxu0 0.0
    %659 = vmatprep.subr.mxu0 0.0
    %660 = vmatpush1.msra.mxu0 0.0
    %661 = vmatprep.subr.mxu0 0.0
    %662 = vmatpush1.msra.mxu0 0.0
    %663 = vmatprep.subr.mxu0 0.0
    %664 = vmatpush1.msra.mxu0 0.0
    %665 = vmatprep.subr.mxu0 0.0
    %666 = vmatpush1.msra.mxu0 0.0
    %667 = vmatprep.subr.mxu0 0.0
    %668 = vmatpush1.msra.mxu0 0.0
    %669 = vmatprep.subr.mxu0 0.0
    %670 = vmatpush1.msra.mxu0 0.0
    %671 = vmatprep.subr.mxu0 0.0
    %672 = vmatpush1.msra.mxu0 0.0
    %673 = vmatprep.subr.mxu0 0.0
    %674 = vmatpush1.msra.mxu0 0.0
    %675 = vmatprep.subr.mxu0 0.0
    %676 = vmatpush1.msra.mxu0 0.0
    %677 = vmatprep.subr.mxu0 0.0
    %678 = vmatpush1.msra.mxu0 0.0
    %679 = vmatprep.subr.mxu0 0.0
    %680 = vmatpush1.msra.mxu0 0.0
    %681 = vmatprep.subr.mxu0 0.0
    %682 = vmatpush1.msra.mxu0 0.0
    %683 = vmatprep.subr.mxu0 0.0
    %684 = vmatpush1.msra.mxu0 0.0
    %685 = vmatprep.subr.mxu0 0.0
    %686 = vmatpush1.msra.mxu0 0.0
    %687 = vmatprep.subr.mxu0 0.0
    %688 = vmatpush1.msra.mxu0 0.0
    %689 = vmatprep.subr.mxu0 0.0
    %690 = vmatpush1.msra.mxu0 0.0
    %691 = vmatprep.subr.mxu0 0.0
    %692 = vmatpush1.msra.mxu0 0.0
    %693 = vmatprep.subr.mxu0 0.0
    %694 = vmatpush1.msra.mxu0 0.0
    %695 = vmatprep.subr.mxu0 0.0
    %696 = vmatpush1.msra.mxu0 0.0
    %697 = vmatprep.subr.mxu0 0.0
    %698 = vmatpush1.msra.mxu0 0.0
    %699 = vmatprep.mubr.f32.mxu0 0.0
    %700 = vmatmul.mubr.f32.gmra.mrb[0].mxu0 %v633
    %v701 = vpop.f32.mrb[0].mxu0
    %v702 = vadd.f32 %v629, %v701
    %v703 = vpop.f32.mrb[0].mxu0
    %v704 = vadd.f32 %v629, %v703
    %705 = vdwg.mxu0
    %706 = vmatprep.subr.mxu0 %v611
    %707 = vmatpush1.msra.mxu0 %v610
    %708 = vmatprep.subr.mxu0 %v615
    %709 = vmatpush1.msra.mxu0 %v614
    %710 = vmatprep.subr.mxu0 %v619
    %711 = vmatpush1.msra.mxu0 %v618
    %712 = vmatprep.subr.mxu0 %v623
    %713 = vmatpush1.msra.mxu0 %v622
    %714 = vmatprep.subr.mxu0 0.0
    %715 = vmatpush1.msra.mxu0 0.0
    %716 = vmatprep.subr.mxu0 0.0
    %717 = vmatpush1.msra.mxu0 0.0
    %718 = vmatprep.subr.mxu0 0.0
    %719 = vmatpush1.msra.mxu0 0.0
    %720 = vmatprep.subr.mxu0 0.0
    %721 = vmatpush1.msra.mxu0 0.0
    %722 = vmatprep.subr.mxu0 0.0
    %723 = vmatpush1.msra.mxu0 0.0
    %724 = vmatprep.subr.mxu0 0.0
    %725 = vmatpush1.msra.mxu0 0.0
    %726 = vmatprep.subr.mxu0 0.0
    %727 = vmatpush1.msra.mxu0 0.0
    %728 = vmatprep.subr.mxu0 0.0
    %729 = vmatpush1.msra.mxu0 0.0
    %730 = vmatprep.subr.mxu0 0.0
    %731 = vmatpush1.msra.mxu0 0.0
    %732 = vmatprep.subr.mxu0 0.0
    %733 = vmatpush1.msra.mxu0 0.0
    %734 = vmatprep.subr.mxu0 0.0
    %735 = vmatpush1.msra.mxu0 0.0
    %736 = vmatprep.subr.mxu0 0.0
    %737 = vmatpush1.msra.mxu0 0.0
    %738 = vmatprep.subr.mxu0 0.0
    %739 = vmatpush1.msra.mxu0 0.0
    %740 = vmatprep.subr.mxu0 0.0
    %741 = vmatpush1.msra.mxu0 0.0
    %742 = vmatprep.subr.mxu0 0.0
    %743 = vmatpush1.msra.mxu0 0.0
    %744 = vmatprep.subr.mxu0 0.0
    %745 = vmatpush1.msra.mxu0 0.0
    %746 = vmatprep.subr.mxu0 0.0
    %747 = vmatpush1.msra.mxu0 0.0
    %748 = vmatprep.subr.mxu0 0.0
    %749 = vmatpush1.msra.mxu0 0.0
    %750 = vmatprep.subr.mxu0 0.0
    %751 = vmatpush1.msra.mxu0 0.0
    %752 = vmatprep.subr.mxu0 0.0
    %753 = vmatpush1.msra.mxu0 0.0
    %754 = vmatprep.subr.mxu0 0.0
    %755 = vmatpush1.msra.mxu0 0.0
    %756 = vmatprep.subr.mxu0 0.0
    %757 = vmatpush1.msra.mxu0 0.0
    %758 = vmatprep.subr.mxu0 0.0
    %759 = vmatpush1.msra.mxu0 0.0
    %760 = vmatprep.subr.mxu0 0.0
    %761 = vmatpush1.msra.mxu0 0.0
    %762 = vmatprep.subr.mxu0 0.0
    %763 = vmatpush1.msra.mxu0 0.0
    %764 = vmatprep.subr.mxu0 0.0
    %765 = vmatpush1.msra.mxu0 0.0
    %766 = vmatprep.subr.mxu0 0.0
    %767 = vmatpush1.msra.mxu0 0.0
    %768 = vmatprep.subr.mxu0 0.0
    %769 = vmatpush1.msra.mxu0 0.0
    %770 = vmatprep.mubr.f32.mxu0 0.0
    %771 = vmatmul.mubr.f32.gmra.mrb[0].mxu0 %v633
    %v772 = vpop.f32.mrb[0].mxu0
    %v773 = vadd.f32 %v629, %v772
    %v774 = vpop.f32.mrb[0].mxu0
    %v775 = vadd.f32 %v629, %v774
    %776 = vdwg.mxu0
    %v781 = vcombine.low %v702, %v704
    %v782 = vcombine.low %v773, %v775
    %785 = vst [vmem:[#allocation2] sm:$0xff] %v781
    %786 = vst [vmem:[#allocation2 + $0x8] sm:$0xff] %v782
    %s787 = sadd.s32 %s399, 3266491143
    %v788 = vstv %s787
    %v789 = vadd.s32 %v431, %v788
    %v790 = vadd.s32 %v432, %v788
    %v791 = vadd.s32 %v433, %v788
    %v792 = vadd.s32 %v434, %v788
    %v793 = vadd.s32 %v435, %v788
    %v794 = vadd.s32 %v436, %v788
    %v795 = vadd.s32 %v437, %v788
    %v796 = vadd.s32 %v438, %v788
    %v797 = vadd.s32 %v439, %v788
    %v798 = vadd.s32 %v440, %v788
    %v799 = vadd.s32 %v441, %v788
    %v800 = vadd.s32 %v442, %v788
    %v801 = vadd.s32 %v443, %v788
    %v802 = vadd.s32 %v444, %v788
    %v803 = vadd.s32 %v445, %v788
    %v804 = vadd.s32 %v446, %v788
    %v805 = vshrl.u32 %v789, 16
    %v806 = vshrl.u32 %v790, 16
    %v807 = vshrl.u32 %v791, 16
    %v808 = vshrl.u32 %v792, 16
    %v809 = vshrl.u32 %v793, 16
    %v810 = vshrl.u32 %v794, 16
    %v811 = vshrl.u32 %v795, 16
    %v812 = vshrl.u32 %v796, 16
    %v813 = vshrl.u32 %v797, 16
    %v814 = vshrl.u32 %v798, 16
    %v815 = vshrl.u32 %v799, 16
    %v816 = vshrl.u32 %v800, 16
    %v817 = vshrl.u32 %v801, 16
    %v818 = vshrl.u32 %v802, 16
    %v819 = vshrl.u32 %v803, 16
    %v820 = vshrl.u32 %v804, 16
    %v821 = vxor.u32 %v789, %v805
    %v822 = vxor.u32 %v790, %v806
    %v823 = vxor.u32 %v791, %v807
    %v824 = vxor.u32 %v792, %v808
    %v825 = vxor.u32 %v793, %v809
    %v826 = vxor.u32 %v794, %v810
    %v827 = vxor.u32 %v795, %v811
    %v828 = vxor.u32 %v796, %v812
    %v829 = vxor.u32 %v797, %v813
    %v830 = vxor.u32 %v798, %v814
    %v831 = vxor.u32 %v799, %v815
    %v832 = vxor.u32 %v800, %v816
    %v833 = vxor.u32 %v801, %v817
    %v834 = vxor.u32 %v802, %v818
    %v835 = vxor.u32 %v803, %v819
    %v836 = vxor.u32 %v804, %v820
    %v837 = vmul.u32 %v821, 2146121005
    %v838 = vmul.u32 %v822, 2146121005
    %v839 = vmul.u32 %v823, 2146121005
    %v840 = vmul.u32 %v824, 2146121005
    %v841 = vmul.u32 %v825, 2146121005
    %v842 = vmul.u32 %v826, 2146121005
    %v843 = vmul.u32 %v827, 2146121005
    %v844 = vmul.u32 %v828, 2146121005
    %v845 = vmul.u32 %v829, 2146121005
    %v846 = vmul.u32 %v830, 2146121005
    %v847 = vmul.u32 %v831, 2146121005
    %v848 = vmul.u32 %v832, 2146121005
    %v849 = vmul.u32 %v833, 2146121005
    %v850 = vmul.u32 %v834, 2146121005
    %v851 = vmul.u32 %v835, 2146121005
    %v852 = vmul.u32 %v836, 2146121005
    %v853 = vshrl.u32 %v837, 15
    %v854 = vshrl.u32 %v838, 15
    %v855 = vshrl.u32 %v839, 15
    %v856 = vshrl.u32 %v840, 15
    %v857 = vshrl.u32 %v841, 15
    %v858 = vshrl.u32 %v842, 15
    %v859 = vshrl.u32 %v843, 15
    %v860 = vshrl.u32 %v844, 15
    %v861 = vshrl.u32 %v845, 15
    %v862 = vshrl.u32 %v846, 15
    %v863 = vshrl.u32 %v847, 15
    %v864 = vshrl.u32 %v848, 15
    %v865 = vshrl.u32 %v849, 15
    %v866 = vshrl.u32 %v850, 15
    %v867 = vshrl.u32 %v851, 15
    %v868 = vshrl.u32 %v852, 15
    %v869 = vxor.u32 %v837, %v853
    %v870 = vxor.u32 %v838, %v854
    %v871 = vxor.u32 %v839, %v855
    %v872 = vxor.u32 %v840, %v856
    %v873 = vxor.u32 %v841, %v857
    %v874 = vxor.u32 %v842, %v858
    %v875 = vxor.u32 %v843, %v859
    %v876 = vxor.u32 %v844, %v860
    %v877 = vxor.u32 %v845, %v861
    %v878 = vxor.u32 %v846, %v862
    %v879 = vxor.u32 %v847, %v863
    %v880 = vxor.u32 %v848, %v864
    %v881 = vxor.u32 %v849, %v865
    %v882 = vxor.u32 %v850, %v866
    %v883 = vxor.u32 %v851, %v867
    %v884 = vxor.u32 %v852, %v868
    %v885 = vmul.u32 %v869, 2221713035
    %v886 = vmul.u32 %v870, 2221713035
    %v887 = vmul.u32 %v871, 2221713035
    %v888 = vmul.u32 %v872, 2221713035
    %v889 = vmul.u32 %v873, 2221713035
    %v890 = vmul.u32 %v874, 2221713035
    %v891 = vmul.u32 %v875, 2221713035
    %v892 = vmul.u32 %v876, 2221713035
    %v893 = vmul.u32 %v877, 2221713035
    %v894 = vmul.u32 %v878, 2221713035
    %v895 = vmul.u32 %v879, 2221713035
    %v896 = vmul.u32 %v880, 2221713035
    %v897 = vmul.u32 %v881, 2221713035
    %v898 = vmul.u32 %v882, 2221713035
    %v899 = vmul.u32 %v883, 2221713035
    %v900 = vmul.u32 %v884, 2221713035
    %v901 = vshrl.u32 %v885, 16
    %v902 = vshrl.u32 %v886, 16
    %v903 = vshrl.u32 %v887, 16
    %v904 = vshrl.u32 %v888, 16
    %v905 = vshrl.u32 %v889, 16
    %v906 = vshrl.u32 %v890, 16
    %v907 = vshrl.u32 %v891, 16
    %v908 = vshrl.u32 %v892, 16
    %v909 = vshrl.u32 %v893, 16
    %v910 = vshrl.u32 %v894, 16
    %v911 = vshrl.u32 %v895, 16
    %v912 = vshrl.u32 %v896, 16
    %v913 = vshrl.u32 %v897, 16
    %v914 = vshrl.u32 %v898, 16
    %v915 = vshrl.u32 %v899, 16
    %v916 = vshrl.u32 %v900, 16
    %v917 = vxor.u32 %v885, %v901
    %v918 = vxor.u32 %v886, %v902
    %v919 = vxor.u32 %v887, %v903
    %v920 = vxor.u32 %v888, %v904
    %v921 = vxor.u32 %v889, %v905
    %v922 = vxor.u32 %v890, %v906
    %v923 = vxor.u32 %v891, %v907
    %v924 = vxor.u32 %v892, %v908
    %v925 = vxor.u32 %v893, %v909
    %v926 = vxor.u32 %v894, %v910
    %v927 = vxor.u32 %v895, %v911
    %v928 = vxor.u32 %v896, %v912
    %v929 = vxor.u32 %v897, %v913
    %v930 = vxor.u32 %v898, %v914
    %v931 = vxor.u32 %v899, %v915
    %v932 = vxor.u32 %v900, %v916
    %vm933 = vcmp.ge.u32.totalorder %v917, 429496729
    %vm934 = vcmp.ge.u32.totalorder %v918, 429496729
    %vm935 = vcmp.ge.u32.totalorder %v919, 429496729
    %vm936 = vcmp.ge.u32.totalorder %v920, 429496729
    %vm937 = vcmp.ge.u32.totalorder %v921, 429496729
    %vm938 = vcmp.ge.u32.totalorder %v922, 429496729
    %vm939 = vcmp.ge.u32.totalorder %v923, 429496729
    %vm940 = vcmp.ge.u32.totalorder %v924, 429496729
    %vm941 = vcmp.ge.u32.totalorder %v925, 429496729
    %vm942 = vcmp.ge.u32.totalorder %v926, 429496729
    %vm943 = vcmp.ge.u32.totalorder %v927, 429496729
    %vm944 = vcmp.ge.u32.totalorder %v928, 429496729
    %vm945 = vcmp.ge.u32.totalorder %v929, 429496729
    %vm946 = vcmp.ge.u32.totalorder %v930, 429496729
    %vm947 = vcmp.ge.u32.totalorder %v931, 429496729
    %vm948 = vcmp.ge.u32.totalorder %v932, 429496729
    %v949 = vsel %vm933, %v383, 0.0
    %v950 = vsel %vm934, %v384, 0.0
    %v951 = vsel %vm935, %v385, 0.0
    %v952 = vsel %vm936, %v386, 0.0
    %v953 = vsel %vm937, %v387, 0.0
    %v954 = vsel %vm938, %v388, 0.0
    %v955 = vsel %vm939, %v389, 0.0
    %v956 = vsel %vm940, %v390, 0.0
    %v957 = vsel %vm941, %v391, 0.0
    %v958 = vsel %vm942, %v392, 0.0
    %v959 = vsel %vm943, %v393, 0.0
    %v960 = vsel %vm944, %v394, 0.0
    %v961 = vsel %vm945, %v395, 0.0
    %v962 = vsel %vm946, %v396, 0.0
    %v963 = vsel %vm947, %v397, 0.0
    %v964 = vsel %vm948, %v398, 0.0
    %v965 = vld [vmem:[%s3] sm:$0xf]
    %v966 = vld [vmem:[%s4] sm:$0xf]
    %968 = vset.pattern.permute.xlu0 0
    %969 = vperm.xlu0 %968, %v966
    %v970 = vpop.permute.xlu0 %969
    %v973 = vsel %vm631, %v965, 0
    %975 = vmatprep.subr.mxu0 %v950
    %976 = vmatpush1.msra.mxu0 %v949
    %977 = vmatprep.subr.mxu0 %v954
    %978 = vmatpush1.msra.mxu0 %v953
    %979 = vmatprep.subr.mxu0 %v958
    %980 = vmatpush1.msra.mxu0 %v957
    %981 = vmatprep.subr.mxu0 %v962
    %982 = vmatpush1.msra.mxu0 %v961
    %983 = vmatprep.subr.mxu0 0.0
    %984 = vmatpush1.msra.mxu0 0.0
    %985 = vmatprep.subr.mxu0 0.0
    %986 = vmatpush1.msra.mxu0 0.0
    %987 = vmatprep.subr.mxu0 0.0
    %988 = vmatpush1.msra.mxu0 0.0
    %989 = vmatprep.subr.mxu0 0.0
    %990 = vmatpush1.msra.mxu0 0.0
    %991 = vmatprep.subr.mxu0 0.0
    %992 = vmatpush1.msra.mxu0 0.0
    %993 = vmatprep.subr.mxu0 0.0
    %994 = vmatpush1.msra.mxu0 0.0
    %995 = vmatprep.subr.mxu0 0.0
    %996 = vmatpush1.msra.mxu0 0.0
    %997 = vmatprep.subr.mxu0 0.0
    %998 = vmatpush1.msra.mxu0 0.0
    %999 = vmatprep.subr.mxu0 0.0
    %1000 = vmatpush1.msra.mxu0 0.0
    %1001 = vmatprep.subr.mxu0 0.0
    %1002 = vmatpush1.msra.mxu0 0.0
    %1003 = vmatprep.subr.mxu0 0.0
    %1004 = vmatpush1.msra.mxu0 0.0
    %1005 = vmatprep.subr.mxu0 0.0
    %1006 = vmatpush1.msra.mxu0 0.0
    %1007 = vmatprep.subr.mxu0 0.0
    %1008 = vmatpush1.msra.mxu0 0.0
    %1009 = vmatprep.subr.mxu0 0.0
    %1010 = vmatpush1.msra.mxu0 0.0
    %1011 = vmatprep.subr.mxu0 0.0
    %1012 = vmatpush1.msra.mxu0 0.0
    %1013 = vmatprep.subr.mxu0 0.0
    %1014 = vmatpush1.msra.mxu0 0.0
    %1015 = vmatprep.subr.mxu0 0.0
    %1016 = vmatpush1.msra.mxu0 0.0
    %1017 = vmatprep.subr.mxu0 0.0
    %1018 = vmatpush1.msra.mxu0 0.0
    %1019 = vmatprep.subr.mxu0 0.0
    %1020 = vmatpush1.msra.mxu0 0.0
    %1021 = vmatprep.subr.mxu0 0.0
    %1022 = vmatpush1.msra.mxu0 0.0
    %1023 = vmatprep.subr.mxu0 0.0
    %1024 = vmatpush1.msra.mxu0 0.0
    %1025 = vmatprep.subr.mxu0 0.0
    %1026 = vmatpush1.msra.mxu0 0.0
    %1027 = vmatprep.subr.mxu0 0.0
    %1028 = vmatpush1.msra.mxu0 0.0
    %1029 = vmatprep.subr.mxu0 0.0
    %1030 = vmatpush1.msra.mxu0 0.0
    %1031 = vmatprep.subr.mxu0 0.0
    %1032 = vmatpush1.msra.mxu0 0.0
    %1033 = vmatprep.subr.mxu0 0.0
    %1034 = vmatpush1.msra.mxu0 0.0
    %1035 = vmatprep.subr.mxu0 0.0
    %1036 = vmatpush1.msra.mxu0 0.0
    %1037 = vmatprep.subr.mxu0 0.0
    %1038 = vmatpush1.msra.mxu0 0.0
    %1039 = vmatprep.mubr.f32.mxu0 0.0
    %1040 = vmatmul.mubr.f32.gmra.mrb[0].mxu0 %v973
    %v1041 = vpop.f32.mrb[0].mxu0
    %v1042 = vadd.f32 %v970, %v1041
    %v1043 = vpop.f32.mrb[0].mxu0
    %v1044 = vadd.f32 %v970, %v1043
    %1045 = vdwg.mxu0
    %1046 = vmatprep.subr.mxu0 %v952
    %1047 = vmatpush1.msra.mxu0 %v951
    %1048 = vmatprep.subr.mxu0 %v956
    %1049 = vmatpush1.msra.mxu0 %v955
    %1050 = vmatprep.subr.mxu0 %v960
    %1051 = vmatpush1.msra.mxu0 %v959
    %1052 = vmatprep.subr.mxu0 %v964
    %1053 = vmatpush1.msra.mxu0 %v963
    %1054 = vmatprep.subr.mxu0 0.0
    %1055 = vmatpush1.msra.mxu0 0.0
    %1056 = vmatprep.subr.mxu0 0.0
    %1057 = vmatpush1.msra.mxu0 0.0
    %1058 = vmatprep.subr.mxu0 0.0
    %1059 = vmatpush1.msra.mxu0 0.0
    %1060 = vmatprep.subr.mxu0 0.0
    %1061 = vmatpush1.msra.mxu0 0.0
    %1062 = vmatprep.subr.mxu0 0.0
    %1063 = vmatpush1.msra.mxu0 0.0
    %1064 = vmatprep.subr.mxu0 0.0
    %1065 = vmatpush1.msra.mxu0 0.0
    %1066 = vmatprep.subr.mxu0 0.0
    %1067 = vmatpush1.msra.mxu0 0.0
    %1068 = vmatprep.subr.mxu0 0.0
    %1069 = vmatpush1.msra.mxu0 0.0
    %1070 = vmatprep.subr.mxu0 0.0
    %1071 = vmatpush1.msra.mxu0 0.0
    %1072 = vmatprep.subr.mxu0 0.0
    %1073 = vmatpush1.msra.mxu0 0.0
    %1074 = vmatprep.subr.mxu0 0.0
    %1075 = vmatpush1.msra.mxu0 0.0
    %1076 = vmatprep.subr.mxu0 0.0
    %1077 = vmatpush1.msra.mxu0 0.0
    %1078 = vmatprep.subr.mxu0 0.0
    %1079 = vmatpush1.msra.mxu0 0.0
    %1080 = vmatprep.subr.mxu0 0.0
    %1081 = vmatpush1.msra.mxu0 0.0
    %1082 = vmatprep.subr.mxu0 0.0
    %1083 = vmatpush1.msra.mxu0 0.0
    %1084 = vmatprep.subr.mxu0 0.0
    %1085 = vmatpush1.msra.mxu0 0.0
    %1086 = vmatprep.subr.mxu0 0.0
    %1087 = vmatpush1.msra.mxu0 0.0
    %1088 = vmatprep.subr.mxu0 0.0
    %1089 = vmatpush1.msra.mxu0 0.0
    %1090 = vmatprep.subr.mxu0 0.0
    %1091 = vmatpush1.msra.mxu0 0.0
    %1092 = vmatprep.subr.mxu0 0.0
    %1093 = vmatpush1.msra.mxu0 0.0
    %1094 = vmatprep.subr.mxu0 0.0
    %1095 = vmatpush1.msra.mxu0 0.0
    %1096 = vmatprep.subr.mxu0 0.0
    %1097 = vmatpush1.msra.mxu0 0.0
    %1098 = vmatprep.subr.mxu0 0.0
    %1099 = vmatpush1.msra.mxu0 0.0
    %1100 = vmatprep.subr.mxu0 0.0
    %1101 = vmatpush1.msra.mxu0 0.0
    %1102 = vmatprep.subr.mxu0 0.0
    %1103 = vmatpush1.msra.mxu0 0.0
    %1104 = vmatprep.subr.mxu0 0.0
    %1105 = vmatpush1.msra.mxu0 0.0
    %1106 = vmatprep.subr.mxu0 0.0
    %1107 = vmatpush1.msra.mxu0 0.0
    %1108 = vmatprep.subr.mxu0 0.0
    %1109 = vmatpush1.msra.mxu0 0.0
    %1110 = vmatprep.mubr.f32.mxu0 0.0
    %1111 = vmatmul.mubr.f32.gmra.mrb[0].mxu0 %v973
    %v1112 = vpop.f32.mrb[0].mxu0
    %v1113 = vadd.f32 %v970, %v1112
    %v1114 = vpop.f32.mrb[0].mxu0
    %v1115 = vadd.f32 %v970, %v1114
    %1116 = vdwg.mxu0
    %v1121 = vcombine.low %v1042, %v1044
    %v1122 = vcombine.low %v1113, %v1115
    %s1125 = scalar_lea.vmem [#allocation2], 16
    %1126 = vst [vmem:[%s1125] sm:$0xff] %v1121
    %1127 = vst [vmem:[%s1125 + $0x8] sm:$0xff] %v1122
    %s1128 = sadd.s32 %s399, 2238013756
    %v1129 = vstv %s1128
    %v1130 = vadd.s32 %v431, %v1129
    %v1131 = vadd.s32 %v432, %v1129
    %v1132 = vadd.s32 %v433, %v1129
    %v1133 = vadd.s32 %v434, %v1129
    %v1134 = vadd.s32 %v435, %v1129
    %v1135 = vadd.s32 %v436, %v1129
    %v1136 = vadd.s32 %v437, %v1129
    %v1137 = vadd.s32 %v438, %v1129
    %v1138 = vadd.s32 %v439, %v1129
    %v1139 = vadd.s32 %v440, %v1129
    %v1140 = vadd.s32 %v441, %v1129
    %v1141 = vadd.s32 %v442, %v1129
    %v1142 = vadd.s32 %v443, %v1129
    %v1143 = vadd.s32 %v444, %v1129
    %v1144 = vadd.s32 %v445, %v1129
    %v1145 = vadd.s32 %v446, %v1129
    %v1146 = vshrl.u32 %v1130, 16
    %v1147 = vshrl.u32 %v1131, 16
    %v1148 = vshrl.u32 %v1132, 16
    %v1149 = vshrl.u32 %v1133, 16
    %v1150 = vshrl.u32 %v1134, 16
    %v1151 = vshrl.u32 %v1135, 16
    %v1152 = vshrl.u32 %v1136, 16
    %v1153 = vshrl.u32 %v1137, 16
    %v1154 = vshrl.u32 %v1138, 16
    %v1155 = vshrl.u32 %v1139, 16
    %v1156 = vshrl.u32 %v1140, 16
    %v1157 = vshrl.u32 %v1141, 16
    %v1158 = vshrl.u32 %v1142, 16
    %v1159 = vshrl.u32 %v1143, 16
    %v1160 = vshrl.u32 %v1144, 16
    %v1161 = vshrl.u32 %v1145, 16
    %v1162 = vxor.u32 %v1130, %v1146
    %v1163 = vxor.u32 %v1131, %v1147
    %v1164 = vxor.u32 %v1132, %v1148
    %v1165 = vxor.u32 %v1133, %v1149
    %v1166 = vxor.u32 %v1134, %v1150
    %v1167 = vxor.u32 %v1135, %v1151
    %v1168 = vxor.u32 %v1136, %v1152
    %v1169 = vxor.u32 %v1137, %v1153
    %v1170 = vxor.u32 %v1138, %v1154
    %v1171 = vxor.u32 %v1139, %v1155
    %v1172 = vxor.u32 %v1140, %v1156
    %v1173 = vxor.u32 %v1141, %v1157
    %v1174 = vxor.u32 %v1142, %v1158
    %v1175 = vxor.u32 %v1143, %v1159
    %v1176 = vxor.u32 %v1144, %v1160
    %v1177 = vxor.u32 %v1145, %v1161
    %v1178 = vmul.u32 %v1162, 2146121005
    %v1179 = vmul.u32 %v1163, 2146121005
    %v1180 = vmul.u32 %v1164, 2146121005
    %v1181 = vmul.u32 %v1165, 2146121005
    %v1182 = vmul.u32 %v1166, 2146121005
    %v1183 = vmul.u32 %v1167, 2146121005
    %v1184 = vmul.u32 %v1168, 2146121005
    %v1185 = vmul.u32 %v1169, 2146121005
    %v1186 = vmul.u32 %v1170, 2146121005
    %v1187 = vmul.u32 %v1171, 2146121005
    %v1188 = vmul.u32 %v1172, 2146121005
    %v1189 = vmul.u32 %v1173, 2146121005
    %v1190 = vmul.u32 %v1174, 2146121005
    %v1191 = vmul.u32 %v1175, 2146121005
    %v1192 = vmul.u32 %v1176, 2146121005
    %v1193 = vmul.u32 %v1177, 2146121005
    %v1194 = vshrl.u32 %v1178, 15
    %v1195 = vshrl.u32 %v1179, 15
    %v1196 = vshrl.u32 %v1180, 15
    %v1197 = vshrl.u32 %v1181, 15
    %v1198 = vshrl.u32 %v1182, 15
    %v1199 = vshrl.u32 %v1183, 15
    %v1200 = vshrl.u32 %v1184, 15
    %v1201 = vshrl.u32 %v1185, 15
    %v1202 = vshrl.u32 %v1186, 15
    %v1203 = vshrl.u32 %v1187, 15
    %v1204 = vshrl.u32 %v1188, 15
    %v1205 = vshrl.u32 %v1189, 15
    %v1206 = vshrl.u32 %v1190, 15
    %v1207 = vshrl.u32 %v1191, 15
    %v1208 = vshrl.u32 %v1192, 15
    %v1209 = vshrl.u32 %v1193, 15
    %v1210 = vxor.u32 %v1178, %v1194
    %v1211 = vxor.u32 %v1179, %v1195
    %v1212 = vxor.u32 %v1180, %v1196
    %v1213 = vxor.u32 %v1181, %v1197
    %v1214 = vxor.u32 %v1182, %v1198
    %v1215 = vxor.u32 %v1183, %v1199
    %v1216 = vxor.u32 %v1184, %v1200
    %v1217 = vxor.u32 %v1185, %v1201
    %v1218 = vxor.u32 %v1186, %v1202
    %v1219 = vxor.u32 %v1187, %v1203
    %v1220 = vxor.u32 %v1188, %v1204
    %v1221 = vxor.u32 %v1189, %v1205
    %v1222 = vxor.u32 %v1190, %v1206
    %v1223 = vxor.u32 %v1191, %v1207
    %v1224 = vxor.u32 %v1192, %v1208
    %v1225 = vxor.u32 %v1193, %v1209
    %v1226 = vmul.u32 %v1210, 2221713035
    %v1227 = vmul.u32 %v1211, 2221713035
    %v1228 = vmul.u32 %v1212, 2221713035
    %v1229 = vmul.u32 %v1213, 2221713035
    %v1230 = vmul.u32 %v1214, 2221713035
    %v1231 = vmul.u32 %v1215, 2221713035
    %v1232 = vmul.u32 %v1216, 2221713035
    %v1233 = vmul.u32 %v1217, 2221713035
    %v1234 = vmul.u32 %v1218, 2221713035
    %v1235 = vmul.u32 %v1219, 2221713035
    %v1236 = vmul.u32 %v1220, 2221713035
    %v1237 = vmul.u32 %v1221, 2221713035
    %v1238 = vmul.u32 %v1222, 2221713035
    %v1239 = vmul.u32 %v1223, 2221713035
    %v1240 = vmul.u32 %v1224, 2221713035
    %v1241 = vmul.u32 %v1225, 2221713035
    %v1242 = vshrl.u32 %v1226, 16
    %v1243 = vshrl.u32 %v1227, 16
    %v1244 = vshrl.u32 %v1228, 16
    %v1245 = vshrl.u32 %v1229, 16
    %v1246 = vshrl.u32 %v1230, 16
    %v1247 = vshrl.u32 %v1231, 16
    %v1248 = vshrl.u32 %v1232, 16
    %v1249 = vshrl.u32 %v1233, 16
    %v1250 = vshrl.u32 %v1234, 16
    %v1251 = vshrl.u32 %v1235, 16
    %v1252 = vshrl.u32 %v1236, 16
    %v1253 = vshrl.u32 %v1237, 16
    %v1254 = vshrl.u32 %v1238, 16
    %v1255 = vshrl.u32 %v1239, 16
    %v1256 = vshrl.u32 %v1240, 16
    %v1257 = vshrl.u32 %v1241, 16
    %v1258 = vxor.u32 %v1226, %v1242
    %v1259 = vxor.u32 %v1227, %v1243
    %v1260 = vxor.u32 %v1228, %v1244
    %v1261 = vxor.u32 %v1229, %v1245
    %v1262 = vxor.u32 %v1230, %v1246
    %v1263 = vxor.u32 %v1231, %v1247
    %v1264 = vxor.u32 %v1232, %v1248
    %v1265 = vxor.u32 %v1233, %v1249
    %v1266 = vxor.u32 %v1234, %v1250
    %v1267 = vxor.u32 %v1235, %v1251
    %v1268 = vxor.u32 %v1236, %v1252
    %v1269 = vxor.u32 %v1237, %v1253
    %v1270 = vxor.u32 %v1238, %v1254
    %v1271 = vxor.u32 %v1239, %v1255
    %v1272 = vxor.u32 %v1240, %v1256
    %v1273 = vxor.u32 %v1241, %v1257
    %vm1274 = vcmp.ge.u32.totalorder %v1258, 429496729
    %vm1275 = vcmp.ge.u32.totalorder %v1259, 429496729
    %vm1276 = vcmp.ge.u32.totalorder %v1260, 429496729
    %vm1277 = vcmp.ge.u32.totalorder %v1261, 429496729
    %vm1278 = vcmp.ge.u32.totalorder %v1262, 429496729
    %vm1279 = vcmp.ge.u32.totalorder %v1263, 429496729
    %vm1280 = vcmp.ge.u32.totalorder %v1264, 429496729
    %vm1281 = vcmp.ge.u32.totalorder %v1265, 429496729
    %vm1282 = vcmp.ge.u32.totalorder %v1266, 429496729
    %vm1283 = vcmp.ge.u32.totalorder %v1267, 429496729
    %vm1284 = vcmp.ge.u32.totalorder %v1268, 429496729
    %vm1285 = vcmp.ge.u32.totalorder %v1269, 429496729
    %vm1286 = vcmp.ge.u32.totalorder %v1270, 429496729
    %vm1287 = vcmp.ge.u32.totalorder %v1271, 429496729
    %vm1288 = vcmp.ge.u32.totalorder %v1272, 429496729
    %vm1289 = vcmp.ge.u32.totalorder %v1273, 429496729
    %v1290 = vsel %vm1274, %v383, 0.0
    %v1291 = vsel %vm1275, %v384, 0.0
    %v1292 = vsel %vm1276, %v385, 0.0
    %v1293 = vsel %vm1277, %v386, 0.0
    %v1294 = vsel %vm1278, %v387, 0.0
    %v1295 = vsel %vm1279, %v388, 0.0
    %v1296 = vsel %vm1280, %v389, 0.0
    %v1297 = vsel %vm1281, %v390, 0.0
    %v1298 = vsel %vm1282, %v391, 0.0
    %v1299 = vsel %vm1283, %v392, 0.0
    %v1300 = vsel %vm1284, %v393, 0.0
    %v1301 = vsel %vm1285, %v394, 0.0
    %v1302 = vsel %vm1286, %v395, 0.0
    %v1303 = vsel %vm1287, %v396, 0.0
    %v1304 = vsel %vm1288, %v397, 0.0
    %v1305 = vsel %vm1289, %v398, 0.0
    %v1306 = vld [vmem:[%s3] sm:$0xf]
    %v1307 = vld [vmem:[%s4] sm:$0xf]
    %1309 = vset.pattern.permute.xlu0 0
    %1310 = vperm.xlu0 %1309, %v1307
    %v1311 = vpop.permute.xlu0 %1310
    %v1314 = vsel %vm631, %v1306, 0
    %1316 = vmatprep.subr.mxu0 %v1291
    %1317 = vmatpush1.msra.mxu0 %v1290
    %1318 = vmatprep.subr.mxu0 %v1295
    %1319 = vmatpush1.msra.mxu0 %v1294
    %1320 = vmatprep.subr.mxu0 %v1299
    %1321 = vmatpush1.msra.mxu0 %v1298
    %1322 = vmatprep.subr.mxu0 %v1303
    %1323 = vmatpush1.msra.mxu0 %v1302
    %1324 = vmatprep.subr.mxu0 0.0
    %1325 = vmatpush1.msra.mxu0 0.0
    %1326 = vmatprep.subr.mxu0 0.0
    %1327 = vmatpush1.msra.mxu0 0.0
    %1328 = vmatprep.subr.mxu0 0.0
    %1329 = vmatpush1.msra.mxu0 0.0
    %1330 = vmatprep.subr.mxu0 0.0
    %1331 = vmatpush1.msra.mxu0 0.0
    %1332 = vmatprep.subr.mxu0 0.0
    %1333 = vmatpush1.msra.mxu0 0.0
    %1334 = vmatprep.subr.mxu0 0.0
    %1335 = vmatpush1.msra.mxu0 0.0
    %1336 = vmatprep.subr.mxu0 0.0
    %1337 = vmatpush1.msra.mxu0 0.0
    %1338 = vmatprep.subr.mxu0 0.0
    %1339 = vmatpush1.msra.mxu0 0.0
    %1340 = vmatprep.subr.mxu0 0.0
    %1341 = vmatpush1.msra.mxu0 0.0
    %1342 = vmatprep.subr.mxu0 0.0
    %1343 = vmatpush1.msra.mxu0 0.0
    %1344 = vmatprep.subr.mxu0 0.0
    %1345 = vmatpush1.msra.mxu0 0.0
    %1346 = vmatprep.subr.mxu0 0.0
    %1347 = vmatpush1.msra.mxu0 0.0
    %1348 = vmatprep.subr.mxu0 0.0
    %1349 = vmatpush1.msra.mxu0 0.0
    %1350 = vmatprep.subr.mxu0 0.0
    %1351 = vmatpush1.msra.mxu0 0.0
    %1352 = vmatprep.subr.mxu0 0.0
    %1353 = vmatpush1.msra.mxu0 0.0
    %1354 = vmatprep.subr.mxu0 0.0
    %1355 = vmatpush1.msra.mxu0 0.0
    %1356 = vmatprep.subr.mxu0 0.0
    %1357 = vmatpush1.msra.mxu0 0.0
    %1358 = vmatprep.subr.mxu0 0.0
    %1359 = vmatpush1.msra.mxu0 0.0
    %1360 = vmatprep.subr.mxu0 0.0
    %1361 = vmatpush1.msra.mxu0 0.0
    %1362 = vmatprep.subr.mxu0 0.0
    %1363 = vmatpush1.msra.mxu0 0.0
    %1364 = vmatprep.subr.mxu0 0.0
    %1365 = vmatpush1.msra.mxu0 0.0
    %1366 = vmatprep.subr.mxu0 0.0
    %1367 = vmatpush1.msra.mxu0 0.0
    %1368 = vmatprep.subr.mxu0 0.0
    %1369 = vmatpush1.msra.mxu0 0.0
    %1370 = vmatprep.subr.mxu0 0.0
    %1371 = vmatpush1.msra.mxu0 0.0
    %1372 = vmatprep.subr.mxu0 0.0
    %1373 = vmatpush1.msra.mxu0 0.0
    %1374 = vmatprep.subr.mxu0 0.0
    %1375 = vmatpush1.msra.mxu0 0.0
    %1376 = vmatprep.subr.mxu0 0.0
    %1377 = vmatpush1.msra.mxu0 0.0
    %1378 = vmatprep.subr.mxu0 0.0
    %1379 = vmatpush1.msra.mxu0 0.0
    %1380 = vmatprep.mubr.f32.mxu0 0.0
    %1381 = vmatmul.mubr.f32.gmra.mrb[0].mxu0 %v1314
    %v1382 = vpop.f32.mrb[0].mxu0
    %v1383 = vadd.f32 %v1311, %v1382
    %v1384 = vpop.f32.mrb[0].mxu0
    %v1385 = vadd.f32 %v1311, %v1384
    %1386 = vdwg.mxu0
    %1387 = vmatprep.subr.mxu0 %v1293
    %1388 = vmatpush1.msra.mxu0 %v1292
    %1389 = vmatprep.subr.mxu0 %v1297
    %1390 = vmatpush1.msra.mxu0 %v1296
    %1391 = vmatprep.subr.mxu0 %v1301
    %1392 = vmatpush1.msra.mxu0 %v1300
    %1393 = vmatprep.subr.mxu0 %v1305
    %1394 = vmatpush1.msra.mxu0 %v1304
    %1395 = vmatprep.subr.mxu0 0.0
    %1396 = vmatpush1.msra.mxu0 0.0
    %1397 = vmatprep.subr.mxu0 0.0
    %1398 = vmatpush1.msra.mxu0 0.0
    %1399 = vmatprep.subr.mxu0 0.0
    %1400 = vmatpush1.msra.mxu0 0.0
    %1401 = vmatprep.subr.mxu0 0.0
    %1402 = vmatpush1.msra.mxu0 0.0
    %1403 = vmatprep.subr.mxu0 0.0
    %1404 = vmatpush1.msra.mxu0 0.0
    %1405 = vmatprep.subr.mxu0 0.0
    %1406 = vmatpush1.msra.mxu0 0.0
    %1407 = vmatprep.subr.mxu0 0.0
    %1408 = vmatpush1.msra.mxu0 0.0
    %1409 = vmatprep.subr.mxu0 0.0
    %1410 = vmatpush1.msra.mxu0 0.0
    %1411 = vmatprep.subr.mxu0 0.0
    %1412 = vmatpush1.msra.mxu0 0.0
    %1413 = vmatprep.subr.mxu0 0.0
    %1414 = vmatpush1.msra.mxu0 0.0
    %1415 = vmatprep.subr.mxu0 0.0
    %1416 = vmatpush1.msra.mxu0 0.0
    %1417 = vmatprep.subr.mxu0 0.0
    %1418 = vmatpush1.msra.mxu0 0.0
    %1419 = vmatprep.subr.mxu0 0.0
    %1420 = vmatpush1.msra.mxu0 0.0
    %1421 = vmatprep.subr.mxu0 0.0
    %1422 = vmatpush1.msra.mxu0 0.0
    %1423 = vmatprep.subr.mxu0 0.0
    %1424 = vmatpush1.msra.mxu0 0.0
    %1425 = vmatprep.subr.mxu0 0.0
    %1426 = vmatpush1.msra.mxu0 0.0
    %1427 = vmatprep.subr.mxu0 0.0
    %1428 = vmatpush1.msra.mxu0 0.0
    %1429 = vmatprep.subr.mxu0 0.0
    %1430 = vmatpush1.msra.mxu0 0.0
    %1431 = vmatprep.subr.mxu0 0.0
    %1432 = vmatpush1.msra.mxu0 0.0
    %1433 = vmatprep.subr.mxu0 0.0
    %1434 = vmatpush1.msra.mxu0 0.0
    %1435 = vmatprep.subr.mxu0 0.0
    %1436 = vmatpush1.msra.mxu0 0.0
    %1437 = vmatprep.subr.mxu0 0.0
    %1438 = vmatpush1.msra.mxu0 0.0
    %1439 = vmatprep.subr.mxu0 0.0
    %1440 = vmatpush1.msra.mxu0 0.0
    %1441 = vmatprep.subr.mxu0 0.0
    %1442 = vmatpush1.msra.mxu0 0.0
    %1443 = vmatprep.subr.mxu0 0.0
    %1444 = vmatpush1.msra.mxu0 0.0
    %1445 = vmatprep.subr.mxu0 0.0
    %1446 = vmatpush1.msra.mxu0 0.0
    %1447 = vmatprep.subr.mxu0 0.0
    %1448 = vmatpush1.msra.mxu0 0.0
    %1449 = vmatprep.subr.mxu0 0.0
    %1450 = vmatpush1.msra.mxu0 0.0
    %1451 = vmatprep.mubr.f32.mxu0 0.0
    %1452 = vmatmul.mubr.f32.gmra.mrb[0].mxu0 %v1314
    %v1453 = vpop.f32.mrb[0].mxu0
    %v1454 = vadd.f32 %v1311, %v1453
    %v1455 = vpop.f32.mrb[0].mxu0
    %v1456 = vadd.f32 %v1311, %v1455
    %1457 = vdwg.mxu0
    %v1462 = vcombine.low %v1383, %v1385
    %v1463 = vcombine.low %v1454, %v1456
    %s1466 = scalar_lea.vmem [#allocation2], 32
    %1467 = vst [vmem:[%s1466] sm:$0xff] %v1462
    %1468 = vst [vmem:[%s1466 + $0x8] sm:$0xff] %v1463
    // Predicated region
    $region22: #{tpu_custom_call.1} parent=1 // pred_check
      _
    $region23: #{tpu_custom_call.1} parent=1 // pred_check_branch
      %1470 = sbr.rel (0) target = $region25
    $region24: #{tpu_custom_call.1} parent=1 // pred_region
      %s1472 = ssub.s32 768, 768
      %1473 = vsyncadd [#allocation3], %s1472
      %s1474 = sshll.u32 [#allocation2], 4
      %s1475 = int_to_ptr.vmem [resolvable:$true] %s1474
      %1480 = dma.vmem_to_hbm [thread:$0]  %s1475, 768, %s5, [#allocation3], 256, 256, 16
    $region25: #{tpu_custom_call.1} parent=1 // pred_fallthru
      _
    // Predicated region
    $region26: #{tpu_custom_call.1} parent=1 // pred_check
      _
    $region27: #{tpu_custom_call.1} parent=1 // pred_check_branch
      %1482 = sbr.rel (0) target = $region29
    $region28: #{tpu_custom_call.1} parent=1 // pred_region
      %1483 = dma.done [#allocation3], 768
    $region29: #{tpu_custom_call.1} parent=1 // pred_fallthru
      _
    %1484 = vsyncpa [#allocation3], 1

</llo_original>
